<compile_context>
chip_gen: v7x
topology: tpu7x:2x2x1
jax: 0.10.0
libtpu: 0.0.40
codegen_flags: <defaults>
</compile_context>

<pallas_src>
import jax
import jax.numpy as jnp
from jax import lax
from jax.experimental import pallas as pl
from jax.experimental.pallas import tpu as pltpu


def _round_up(n, m):
    return ((n + m - 1) // m) * m


def _make_rnn_kernel(t_total, t_chunk, b_pad, h_pad):
    """Build the kernel closed over static sizes."""
    num_chunks = -(-t_total // t_chunk)
    tail = t_total - (num_chunks - 1) * t_chunk          # 1..t_chunk (static)
    hoist_whh = h_pad <= 256        # W_hh fits in vregs without spilling
    full_unroll = h_pad <= 256      # bound code size / live ranges for big H

    def rnn_kernel(x_ref, wih_ref, whh_ref, bias_ref, wfc_ref, bfc_ref,
                   out_ref, h_ref, xproj_ref):
        # x_ref    : (t_chunk*b_pad, I)      bf16  current chunk, time-major rows
        # wih_ref  : (I, H_pad)              bf16  W_ih^T (zero-padded cols)
        # whh_ref  : (H_pad, H_pad)          bf16  W_hh^T (zero-padded rows/cols)
        # bias_ref : (1, H_pad)              f32   b_ih + b_hh (zero-padded)
        # wfc_ref  : (H_pad, O_pad)          bf16  W_fc^T
        # bfc_ref  : (1, O_pad)              f32
        # out_ref  : (b_pad, O_pad)          f32   written only at the last step
        # h_ref    : (b_pad, H_pad)          f32   hidden state across grid steps
        # xproj_ref: (t_chunk*b_pad, H_pad)  f32   hoisted input projection
        c = pl.program_id(0)

        @pl.when(c == 0)
        def _():
            h_ref[...] = jnp.zeros_like(h_ref)  # h0 = zeros

        # --- hoisted input projection: one big MXU matmul per chunk ----------
        xproj_ref[...] = (
            jnp.dot(x_ref[...], wih_ref[...], preferred_element_type=jnp.float32)
            + bias_ref[...])

        # --- serial recurrence over the timesteps of this chunk --------------
        whh_v = whh_ref[...] if hoist_whh else None   # hoist only when it fits

        def step(t, h):
            w = whh_v if hoist_whh else whh_ref[...]  # large H: re-read (vld slack)
            row = pl.multiple_of(t * b_pad, b_pad)
            pre = xproj_ref[pl.ds(row, b_pad), :] + jnp.dot(
                h.astype(w.dtype), w, preferred_element_type=jnp.float32)
            return jnp.tanh(pre)  # f32 elementwise (EUP), f32 carry

        def run(n_steps):
            u = True if full_unroll else min(8, n_steps)
            h_ref[...] = lax.fori_loop(0, n_steps, step, h_ref[...], unroll=u)

        if tail == t_chunk:
            # T divisible by t_chunk: every chunk full, statically unrolled.
            run(t_chunk)
        else:
            # Full chunks stay statically unrolled; only the tail chunk takes
            # its own (shorter, also static & unrolled) loop.
            is_tail = c == pl.num_programs(0) - 1

            @pl.when(jnp.logical_not(is_tail))
            def _():
                run(t_chunk)

            @pl.when(is_tail)
            def _():
                run(tail)

        # --- final Linear on the last hidden state ----------------------------
        # NOTE: out_spec has a constant index_map, so Pallas writes the
        # revolving output block back to HBM once after the final grid step;
        # writing it only under this pl.when is therefore safe. Don't change
        # the out index_map without revisiting this.
        @pl.when(c == pl.num_programs(0) - 1)
        def _():
            out_ref[...] = (
                jnp.dot(h_ref[...].astype(wfc_ref.dtype), wfc_ref[...],
                        preferred_element_type=jnp.float32)
                + bfc_ref[...]).astype(out_ref.dtype)

    return rnn_kernel


def rnn_model_forward(x, params, *, t_chunk=None, mxu_dtype=jnp.bfloat16,
                      vmem_budget_bytes=24 << 20):
    """x: (B, T, I) float32 -> (B, O) float32."""
    B, T, I = x.shape
    wih_t = params["wih_t"]          # (I, H)
    whh_t = params["whh_t"]          # (H, H)
    bih = params["bih"]              # (1, H)
    bhh = params["bhh"]              # (1, H)
    wfc_t = params["wfc_t"]          # (H, O)
    bfc = params["bfc"]              # (1, O)
    H = whh_t.shape[0]
    O = wfc_t.shape[1]

    # TPU-friendly padded sizes: last dim multiple of 128 lanes; batch padded
    # to 16 so bf16 MXU LHS vregs are fully sublane-packed (16 rows/vreg).
    B_pad = _round_up(B, 16)
    H_pad = _round_up(H, 128)
    O_pad = _round_up(O, 128)

    itemsize = jnp.dtype(mxu_dtype).itemsize
    # VMEM budget (bytes): weights single-buffered, x double-buffered, xproj f32.
    weight_bytes = ((I * H_pad + H_pad * H_pad + H_pad * O_pad) * itemsize
                    + (H_pad + O_pad) * 4)
    fixed_bytes = weight_bytes + B_pad * H_pad * 4 + 2 * B_pad * O_pad * 4
    per_t_bytes = B_pad * (2 * I * itemsize + H_pad * 4)
    if t_chunk is None:
        t_cap = max(1, (vmem_budget_bytes - fixed_bytes) // per_t_bytes)
        t_chunk = int(min(T, min(t_cap, 128)))
    num_chunks = -(-T // t_chunk)
    T_pad = num_chunks * t_chunk
    vmem_limit = int(min(max(2 * (fixed_bytes + per_t_bytes * t_chunk), 32 << 20),
                         64 << 20))

    f32 = jnp.float32
    # Zero-padded weights/biases (padded hidden lanes stay exactly 0 thru tanh).
    wih_p = jnp.zeros((I, H_pad), f32).at[:, :H].set(wih_t).astype(mxu_dtype)
    whh_p = jnp.zeros((H_pad, H_pad), f32).at[:H, :H].set(whh_t).astype(mxu_dtype)
    bias_p = jnp.zeros((1, H_pad), f32).at[:, :H].set(bih + bhh)   # fused bias
    wfc_p = jnp.zeros((H_pad, O_pad), f32).at[:H, :O].set(wfc_t).astype(mxu_dtype)
    bfc_p = jnp.zeros((1, O_pad), f32).at[:, :O].set(bfc)

    # x: (B,T,I) -> time-major, batch/time zero-padded, chunk-flattened 2D slab.
    # Padded timesteps are projected but never consumed by the recurrence.
    x_tm = jnp.transpose(x, (1, 0, 2))
    x_tm = jnp.pad(x_tm, ((0, T_pad - T), (0, B_pad - B), (0, 0)))
    x2d = x_tm.reshape(T_pad * B_pad, I).astype(mxu_dtype)

    const = lambda c: (0, 0)   # weights/bias/output: same block every grid step
    kernel = _make_rnn_kernel(T, t_chunk, B_pad, H_pad)

    cost = pl.CostEstimate(
        flops=(2 * T_pad * B_pad * I * H_pad          # input projection
               + 2 * T * B_pad * H_pad * H_pad        # recurrence
               + 2 * B_pad * H_pad * O_pad),          # final FC
        transcendentals=T * B_pad * H_pad,            # tanh
        bytes_accessed=(T_pad * B_pad * I * itemsize + weight_bytes
                        + B_pad * O_pad * 4),
    )

    def call(single_buffer_weights):
        def wspec(shape):
            # Constant-index operands never change across grid steps ->
            # single-buffer them to halve their VMEM footprint.
            if single_buffer_weights:
                return pl.BlockSpec(shape, const, pipeline_mode=pl.Buffered(1))
            return pl.BlockSpec(shape, const)

        return pl.pallas_call(
            kernel,
            out_shape=jax.ShapeDtypeStruct((B_pad, O_pad), jnp.float32),
            grid_spec=pltpu.PrefetchScalarGridSpec(
                num_scalar_prefetch=0,
                grid=(num_chunks,),
                in_specs=[
                    pl.BlockSpec((t_chunk * B_pad, I), lambda c: (c, 0)),  # x chunk
                    wspec((I, H_pad)),
                    wspec((H_pad, H_pad)),
                    wspec((1, H_pad)),
                    wspec((H_pad, O_pad)),
                    wspec((1, O_pad)),
                ],
                out_specs=pl.BlockSpec((B_pad, O_pad), const),
                scratch_shapes=[
                    pltpu.VMEM((B_pad, H_pad), jnp.float32),            # hidden h
                    pltpu.VMEM((t_chunk * B_pad, H_pad), jnp.float32),  # x proj
                ],
            ),
            compiler_params=pltpu.CompilerParams(
                # Chunk axis carries the recurrence -> sequential.
                dimension_semantics=("arbitrary",),
                vmem_limit_bytes=vmem_limit,
            ),
            cost_estimate=cost,
        )(x2d, wih_p, whh_p, bias_p, wfc_p, bfc_p)

    try:
        out_pad = call(True)
    except Exception:
        # This jax build does not accept pipeline_mode=Buffered(1) on the
        # top-level pallas_call pipeline -> fall back to default 2-buffering.
        out_pad = call(False)

    return out_pad[:B, :O]


def init_params(key, input_size, hidden_size, output_size):
    """Deterministic init mimicking PyTorch's U(-1/sqrt(H), 1/sqrt(H))."""
    ks = jax.random.split(key, 6)
    s = 1.0 / jnp.sqrt(hidden_size)
    wih = jax.random.uniform(ks[0], (hidden_size, input_size), jnp.float32, -s, s)
    whh = jax.random.uniform(ks[1], (hidden_size, hidden_size), jnp.float32, -s, s)
    bih = jax.random.uniform(ks[2], (hidden_size,), jnp.float32, -s, s)
    bhh = jax.random.uniform(ks[3], (hidden_size,), jnp.float32, -s, s)
    wfc = jax.random.uniform(ks[4], (output_size, hidden_size), jnp.float32, -s, s)
    bfc = jax.random.uniform(ks[5], (output_size,), jnp.float32, -s, s)
    return {
        "wih_t": wih.T,                 # (I, H)
        "whh_t": whh.T,                 # (H, H)
        "bih": bih.reshape(1, -1),      # (1, H)
        "bhh": bhh.reshape(1, -1),      # (1, H)
        "wfc_t": wfc.T,                 # (H, O)
        "bfc": bfc.reshape(1, -1),      # (1, O)
    }


def rnn_model_reference(x, params, operand_dtype=jnp.float32):
    """Pure-JAX reference. operand_dtype controls matmul-operand precision."""
    B = x.shape[0]
    H = params["whh_t"].shape[0]
    wih = params["wih_t"].astype(operand_dtype)
    whh = params["whh_t"].astype(operand_dtype)
    wfc = params["wfc_t"].astype(operand_dtype)
    bias = (params["bih"] + params["bhh"]).astype(jnp.float32)
    bfc = params["bfc"].astype(jnp.float32)
    h0 = jnp.zeros((B, H), jnp.float32)

    def step(h, x_t):
        pre = (jnp.dot(x_t.astype(operand_dtype), wih,
                       preferred_element_type=jnp.float32)
               + bias
               + jnp.dot(h.astype(operand_dtype), whh,
                         preferred_element_type=jnp.float32))
        return jnp.tanh(pre), None

    h_last, _ = lax.scan(step, h0, jnp.transpose(x, (1, 0, 2)))
    return (jnp.dot(h_last.astype(operand_dtype), wfc,
                    preferred_element_type=jnp.float32) + bfc)


if __name__ == "__main__":
    # x: (batch, seq, input_size)
    B, T, I, H, O = 2, 8, 16, 32, 8

    key = jax.random.PRNGKey(0)
    kx, kp = jax.random.split(key)
    x = jax.random.normal(kx, (B, T, I), jnp.float32)
    params = init_params(kp, I, H, O)

    out = rnn_model_forward(x, params)
    out = jax.block_until_ready(out)
    assert out.shape == (B, O)

    # Tight check vs. a reference using the same bf16 MXU operands / f32 accum.
    ref_mixed = rnn_model_reference(x, params, operand_dtype=jnp.bfloat16)
    assert jnp.allclose(out, ref_mixed, atol=1e-3, rtol=1e-3), (
        f"max abs diff vs mixed-precision ref: {jnp.max(jnp.abs(out - ref_mixed))}")

    # Loose sanity check vs. the pure-f32 (PyTorch-equivalent) reference;
    # bf16 MXU operands drift ~1e-3..1e-2 over T steps.
    # TODO(synk): offer an f32-operand W_hh path if exact PyTorch parity over
    # long sequences is required.
    ref_f32 = rnn_model_reference(x, params, operand_dtype=jnp.float32)
    assert jnp.allclose(out, ref_f32, atol=1e-1, rtol=1e-1), (
        f"max abs diff vs f32 ref: {jnp.max(jnp.abs(out - ref_f32))}")

    print("KERNEL_OK")
</pallas_src>

<mosaic_0001>
module attributes {stable_mosaic.version = 11 : i64} {
  func.func @rnn_kernel(%arg0: i32, %arg1: memref<128x16xbf16, #tpu.memory_space<vmem>>, %arg2: memref<16x128xbf16, #tpu.memory_space<vmem>>, %arg3: memref<128x128xbf16, #tpu.memory_space<vmem>>, %arg4: memref<1x128xf32, #tpu.memory_space<vmem>>, %arg5: memref<128x128xbf16, #tpu.memory_space<vmem>>, %arg6: memref<1x128xf32, #tpu.memory_space<vmem>>, %arg7: memref<16x128xf32, #tpu.memory_space<vmem>>, %arg8: memref<16x128xf32, #tpu.memory_space<vmem>>, %arg9: memref<128x128xf32, #tpu.memory_space<vmem>>) attributes {dimension_semantics = [#tpu.dimension_semantics<arbitrary>], iteration_bounds = array<i64: 1>, scalar_prefetch = 0 : i64, scratch_operands = 2 : i64, tpu.core_type = #tpu.core_type<tc>, window_params = [{transform_indices = @transform_0, window_bounds = array<i64: 128, 16>}, {pipeline_mode = #tpu.pipeline_mode<synchronous>, transform_indices = @transform_1, window_bounds = array<i64: 16, 128>}, {pipeline_mode = #tpu.pipeline_mode<synchronous>, transform_indices = @transform_2, window_bounds = array<i64: 128, 128>}, {pipeline_mode = #tpu.pipeline_mode<synchronous>, transform_indices = @transform_3, window_bounds = array<i64: 1, 128>}, {pipeline_mode = #tpu.pipeline_mode<synchronous>, transform_indices = @transform_4, window_bounds = array<i64: 128, 128>}, {pipeline_mode = #tpu.pipeline_mode<synchronous>, transform_indices = @transform_5, window_bounds = array<i64: 1, 128>}, {pipeline_mode = #tpu.pipeline_mode<synchronous>, transform_indices = @transform_6, window_bounds = array<i64: 16, 128>}]} {
    %c0_i32 = arith.constant 0 : i32
    %0 = arith.cmpi eq, %arg0, %c0_i32 : i32
    %1 = arith.extui %0 : i1 to i32
    %c0_i32_0 = arith.constant 0 : i32
    %2 = arith.cmpi ne, %1, %c0_i32_0 : i32
    scf.if %2 {
      %cst_40 = arith.constant 0.000000e+00 : f32
      %80 = vector.broadcast %cst_40 : f32 to vector<16x128xf32>
      %c0_41 = arith.constant 0 : index
      %c0_42 = arith.constant 0 : index
      %81 = vector.load %arg8[%c0_41, %c0_42] : memref<16x128xf32, #tpu.memory_space<vmem>>, vector<16x128xf32>
      tpu.vector_store %arg8[%c0_41, %c0_42], %80 {strides = array<i32>} : memref<16x128xf32, #tpu.memory_space<vmem>>, vector<16x128xf32>,
    } else {
    }
    %c0 = arith.constant 0 : index
    %c0_1 = arith.constant 0 : index
    %3 = vector.load %arg1[%c0, %c0_1] : memref<128x16xbf16, #tpu.memory_space<vmem>>, vector<128x16xbf16>
    %c0_2 = arith.constant 0 : index
    %c0_3 = arith.constant 0 : index
    %4 = vector.load %arg2[%c0_2, %c0_3] : memref<16x128xbf16, #tpu.memory_space<vmem>>, vector<16x128xbf16>
    %cst = arith.constant dense<0.000000e+00> : vector<128x128xf32>
    %5 = tpu.matmul %3, %4, %cst {dimension_numbers = #tpu.dot_dimension_numbers<[1], [0], [0], [1], [0, 0, 1, 1], [], []>} : vector<128x16xbf16>, vector<16x128xbf16>, vector<128x128xf32> -> vector<128x128xf32>
    %c0_4 = arith.constant 0 : index
    %c0_5 = arith.constant 0 : index
    %6 = vector.load %arg4[%c0_4, %c0_5] : memref<1x128xf32, #tpu.memory_space<vmem>>, vector<1x128xf32>
    %7 = vector.broadcast %6 : vector<1x128xf32> to vector<128x128xf32>
    %8 = arith.addf %5, %7 : vector<128x128xf32>
    %c0_6 = arith.constant 0 : index
    %c0_7 = arith.constant 0 : index
    %9 = vector.load %arg9[%c0_6, %c0_7] : memref<128x128xf32, #tpu.memory_space<vmem>>, vector<128x128xf32>
    tpu.vector_store %arg9[%c0_6, %c0_7], %8 {strides = array<i32>} : memref<128x128xf32, #tpu.memory_space<vmem>>, vector<128x128xf32>,
    %c0_8 = arith.constant 0 : index
    %c0_9 = arith.constant 0 : index
    %10 = vector.load %arg3[%c0_8, %c0_9] : memref<128x128xbf16, #tpu.memory_space<vmem>>, vector<128x128xbf16>
    %c0_10 = arith.constant 0 : index
    %c0_11 = arith.constant 0 : index
    %11 = vector.load %arg8[%c0_10, %c0_11] : memref<16x128xf32, #tpu.memory_space<vmem>>, vector<16x128xf32>
    %c0_i32_12 = arith.constant 0 : i32
    %c16_i32 = arith.constant 16 : i32
    %12 = arith.muli %c0_i32_12, %c16_i32 : i32
    %13 = tpu.assume_multiple %12, 16 : i32
    %14 = arith.index_cast %13 : i32 to index
    %c0_13 = arith.constant 0 : index
    %15 = vector.load %arg9[%14, %c0_13] : memref<128x128xf32, #tpu.memory_space<vmem>>, vector<16x128xf32>
    %16 = arith.truncf %11 : vector<16x128xf32> to vector<16x128xbf16>
    %cst_14 = arith.constant dense<0.000000e+00> : vector<16x128xf32>
    %17 = tpu.matmul %16, %10, %cst_14 {dimension_numbers = #tpu.dot_dimension_numbers<[1], [0], [0], [1], [0, 0, 1, 1], [], []>} : vector<16x128xbf16>, vector<128x128xbf16>, vector<16x128xf32> -> vector<16x128xf32>
    %18 = arith.addf %15, %17 : vector<16x128xf32>
    %19 = math.tanh %18 : vector<16x128xf32>
    %c1_i32 = arith.constant 1 : i32
    %c16_i32_15 = arith.constant 16 : i32
    %20 = arith.muli %c1_i32, %c16_i32_15 : i32
    %21 = tpu.assume_multiple %20, 16 : i32
    %22 = arith.index_cast %21 : i32 to index
    %c0_16 = arith.constant 0 : index
    %23 = vector.load %arg9[%22, %c0_16] : memref<128x128xf32, #tpu.memory_space<vmem>>, vector<16x128xf32>
    %24 = arith.truncf %19 : vector<16x128xf32> to vector<16x128xbf16>
    %cst_17 = arith.constant dense<0.000000e+00> : vector<16x128xf32>
    %25 = tpu.matmul %24, %10, %cst_17 {dimension_numbers = #tpu.dot_dimension_numbers<[1], [0], [0], [1], [0, 0, 1, 1], [], []>} : vector<16x128xbf16>, vector<128x128xbf16>, vector<16x128xf32> -> vector<16x128xf32>
    %26 = arith.addf %23, %25 : vector<16x128xf32>
    %27 = math.tanh %26 : vector<16x128xf32>
    %c2_i32 = arith.constant 2 : i32
    %c16_i32_18 = arith.constant 16 : i32
    %28 = arith.muli %c2_i32, %c16_i32_18 : i32
    %29 = tpu.assume_multiple %28, 16 : i32
    %30 = arith.index_cast %29 : i32 to index
    %c0_19 = arith.constant 0 : index
    %31 = vector.load %arg9[%30, %c0_19] : memref<128x128xf32, #tpu.memory_space<vmem>>, vector<16x128xf32>
    %32 = arith.truncf %27 : vector<16x128xf32> to vector<16x128xbf16>
    %cst_20 = arith.constant dense<0.000000e+00> : vector<16x128xf32>
    %33 = tpu.matmul %32, %10, %cst_20 {dimension_numbers = #tpu.dot_dimension_numbers<[1], [0], [0], [1], [0, 0, 1, 1], [], []>} : vector<16x128xbf16>, vector<128x128xbf16>, vector<16x128xf32> -> vector<16x128xf32>
    %34 = arith.addf %31, %33 : vector<16x128xf32>
    %35 = math.tanh %34 : vector<16x128xf32>
    %c3_i32 = arith.constant 3 : i32
    %c16_i32_21 = arith.constant 16 : i32
    %36 = arith.muli %c3_i32, %c16_i32_21 : i32
    %37 = tpu.assume_multiple %36, 16 : i32
    %38 = arith.index_cast %37 : i32 to index
    %c0_22 = arith.constant 0 : index
    %39 = vector.load %arg9[%38, %c0_22] : memref<128x128xf32, #tpu.memory_space<vmem>>, vector<16x128xf32>
    %40 = arith.truncf %35 : vector<16x128xf32> to vector<16x128xbf16>
    %cst_23 = arith.constant dense<0.000000e+00> : vector<16x128xf32>
    %41 = tpu.matmul %40, %10, %cst_23 {dimension_numbers = #tpu.dot_dimension_numbers<[1], [0], [0], [1], [0, 0, 1, 1], [], []>} : vector<16x128xbf16>, vector<128x128xbf16>, vector<16x128xf32> -> vector<16x128xf32>
    %42 = arith.addf %39, %41 : vector<16x128xf32>
    %43 = math.tanh %42 : vector<16x128xf32>
    %c4_i32 = arith.constant 4 : i32
    %c16_i32_24 = arith.constant 16 : i32
    %44 = arith.muli %c4_i32, %c16_i32_24 : i32
    %45 = tpu.assume_multiple %44, 16 : i32
    %46 = arith.index_cast %45 : i32 to index
    %c0_25 = arith.constant 0 : index
    %47 = vector.load %arg9[%46, %c0_25] : memref<128x128xf32, #tpu.memory_space<vmem>>, vector<16x128xf32>
    %48 = arith.truncf %43 : vector<16x128xf32> to vector<16x128xbf16>
    %cst_26 = arith.constant dense<0.000000e+00> : vector<16x128xf32>
    %49 = tpu.matmul %48, %10, %cst_26 {dimension_numbers = #tpu.dot_dimension_numbers<[1], [0], [0], [1], [0, 0, 1, 1], [], []>} : vector<16x128xbf16>, vector<128x128xbf16>, vector<16x128xf32> -> vector<16x128xf32>
    %50 = arith.addf %47, %49 : vector<16x128xf32>
    %51 = math.tanh %50 : vector<16x128xf32>
    %c5_i32 = arith.constant 5 : i32
    %c16_i32_27 = arith.constant 16 : i32
    %52 = arith.muli %c5_i32, %c16_i32_27 : i32
    %53 = tpu.assume_multiple %52, 16 : i32
    %54 = arith.index_cast %53 : i32 to index
    %c0_28 = arith.constant 0 : index
    %55 = vector.load %arg9[%54, %c0_28] : memref<128x128xf32, #tpu.memory_space<vmem>>, vector<16x128xf32>
    %56 = arith.truncf %51 : vector<16x128xf32> to vector<16x128xbf16>
    %cst_29 = arith.constant dense<0.000000e+00> : vector<16x128xf32>
    %57 = tpu.matmul %56, %10, %cst_29 {dimension_numbers = #tpu.dot_dimension_numbers<[1], [0], [0], [1], [0, 0, 1, 1], [], []>} : vector<16x128xbf16>, vector<128x128xbf16>, vector<16x128xf32> -> vector<16x128xf32>
    %58 = arith.addf %55, %57 : vector<16x128xf32>
    %59 = math.tanh %58 : vector<16x128xf32>
    %c6_i32 = arith.constant 6 : i32
    %c16_i32_30 = arith.constant 16 : i32
    %60 = arith.muli %c6_i32, %c16_i32_30 : i32
    %61 = tpu.assume_multiple %60, 16 : i32
    %62 = arith.index_cast %61 : i32 to index
    %c0_31 = arith.constant 0 : index
    %63 = vector.load %arg9[%62, %c0_31] : memref<128x128xf32, #tpu.memory_space<vmem>>, vector<16x128xf32>
    %64 = arith.truncf %59 : vector<16x128xf32> to vector<16x128xbf16>
    %cst_32 = arith.constant dense<0.000000e+00> : vector<16x128xf32>
    %65 = tpu.matmul %64, %10, %cst_32 {dimension_numbers = #tpu.dot_dimension_numbers<[1], [0], [0], [1], [0, 0, 1, 1], [], []>} : vector<16x128xbf16>, vector<128x128xbf16>, vector<16x128xf32> -> vector<16x128xf32>
    %66 = arith.addf %63, %65 : vector<16x128xf32>
    %67 = math.tanh %66 : vector<16x128xf32>
    %c7_i32 = arith.constant 7 : i32
    %c16_i32_33 = arith.constant 16 : i32
    %68 = arith.muli %c7_i32, %c16_i32_33 : i32
    %69 = tpu.assume_multiple %68, 16 : i32
    %70 = arith.index_cast %69 : i32 to index
    %c0_34 = arith.constant 0 : index
    %71 = vector.load %arg9[%70, %c0_34] : memref<128x128xf32, #tpu.memory_space<vmem>>, vector<16x128xf32>
    %72 = arith.truncf %67 : vector<16x128xf32> to vector<16x128xbf16>
    %cst_35 = arith.constant dense<0.000000e+00> : vector<16x128xf32>
    %73 = tpu.matmul %72, %10, %cst_35 {dimension_numbers = #tpu.dot_dimension_numbers<[1], [0], [0], [1], [0, 0, 1, 1], [], []>} : vector<16x128xbf16>, vector<128x128xbf16>, vector<16x128xf32> -> vector<16x128xf32>
    %74 = arith.addf %71, %73 : vector<16x128xf32>
    %75 = math.tanh %74 : vector<16x128xf32>
    %c8_i32 = arith.constant 8 : i32
    %c0_36 = arith.constant 0 : index
    %c0_37 = arith.constant 0 : index
    %76 = vector.load %arg8[%c0_36, %c0_37] : memref<16x128xf32, #tpu.memory_space<vmem>>, vector<16x128xf32>
    tpu.vector_store %arg8[%c0_36, %c0_37], %75 {strides = array<i32>} : memref<16x128xf32, #tpu.memory_space<vmem>>, vector<16x128xf32>,
    %c0_i32_38 = arith.constant 0 : i32
    %77 = arith.cmpi eq, %arg0, %c0_i32_38 : i32
    %78 = arith.extui %77 : i1 to i32
    %c0_i32_39 = arith.constant 0 : i32
    %79 = arith.cmpi ne, %78, %c0_i32_39 : i32
    scf.if %79 {
      %c0_40 = arith.constant 0 : index
      %c0_41 = arith.constant 0 : index
      %80 = vector.load %arg8[%c0_40, %c0_41] : memref<16x128xf32, #tpu.memory_space<vmem>>, vector<16x128xf32>
      %81 = arith.truncf %80 : vector<16x128xf32> to vector<16x128xbf16>
      %c0_42 = arith.constant 0 : index
      %c0_43 = arith.constant 0 : index
      %82 = vector.load %arg5[%c0_42, %c0_43] : memref<128x128xbf16, #tpu.memory_space<vmem>>, vector<128x128xbf16>
      %cst_44 = arith.constant dense<0.000000e+00> : vector<16x128xf32>
      %83 = tpu.matmul %81, %82, %cst_44 {dimension_numbers = #tpu.dot_dimension_numbers<[1], [0], [0], [1], [0, 0, 1, 1], [], []>} : vector<16x128xbf16>, vector<128x128xbf16>, vector<16x128xf32> -> vector<16x128xf32>
      %c0_45 = arith.constant 0 : index
      %c0_46 = arith.constant 0 : index
      %84 = vector.load %arg6[%c0_45, %c0_46] : memref<1x128xf32, #tpu.memory_space<vmem>>, vector<1x128xf32>
      %85 = vector.broadcast %84 : vector<1x128xf32> to vector<16x128xf32>
      %86 = arith.addf %83, %85 : vector<16x128xf32>
      %c0_47 = arith.constant 0 : index
      %c0_48 = arith.constant 0 : index
      %87 = vector.load %arg7[%c0_47, %c0_48] : memref<16x128xf32, #tpu.memory_space<vmem>>, vector<16x128xf32>
      tpu.vector_store %arg7[%c0_47, %c0_48], %86 {strides = array<i32>} : memref<16x128xf32, #tpu.memory_space<vmem>>, vector<16x128xf32>,
    } else {
    }
    return
  }
  func.func @transform_0(%arg0: i32) -> (i32, i32) {
    %c0_i32 = arith.constant 0 : i32
    %c0_i32_0 = arith.constant 0 : i32
    return %arg0, %c0_i32 : i32, i32
  }
  func.func @transform_1(%arg0: i32) -> (i32, i32) {
    %c0_i32 = arith.constant 0 : i32
    %c0_i32_0 = arith.constant 0 : i32
    %c0_i32_1 = arith.constant 0 : i32
    return %c0_i32, %c0_i32_0 : i32, i32
  }
  func.func @transform_2(%arg0: i32) -> (i32, i32) {
    %c0_i32 = arith.constant 0 : i32
    %c0_i32_0 = arith.constant 0 : i32
    %c0_i32_1 = arith.constant 0 : i32
    return %c0_i32, %c0_i32_0 : i32, i32
  }
  func.func @transform_3(%arg0: i32) -> (i32, i32) {
    %c0_i32 = arith.constant 0 : i32
    %c0_i32_0 = arith.constant 0 : i32
    %c0_i32_1 = arith.constant 0 : i32
    return %c0_i32, %c0_i32_0 : i32, i32
  }
  func.func @transform_4(%arg0: i32) -> (i32, i32) {
    %c0_i32 = arith.constant 0 : i32
    %c0_i32_0 = arith.constant 0 : i32
    %c0_i32_1 = arith.constant 0 : i32
    return %c0_i32, %c0_i32_0 : i32, i32
  }
  func.func @transform_5(%arg0: i32) -> (i32, i32) {
    %c0_i32 = arith.constant 0 : i32
    %c0_i32_0 = arith.constant 0 : i32
    %c0_i32_1 = arith.constant 0 : i32
    return %c0_i32, %c0_i32_0 : i32, i32
  }
  func.func @transform_6(%arg0: i32) -> (i32, i32) {
    %c0_i32 = arith.constant 0 : i32
    %c0_i32_0 = arith.constant 0 : i32
    %c0_i32_1 = arith.constant 0 : i32
    return %c0_i32, %c0_i32_0 : i32, i32
  }
}

module attributes {stable_mosaic.version = 11 : i64} {
  func.func @rnn_kernel(%arg0: i32, %arg1: memref<128x16xbf16, #tpu.memory_space<vmem>>, %arg2: memref<16x128xbf16, #tpu.memory_space<vmem>>, %arg3: memref<128x128xbf16, #tpu.memory_space<vmem>>, %arg4: memref<1x128xf32, #tpu.memory_space<vmem>>, %arg5: memref<128x128xbf16, #tpu.memory_space<vmem>>, %arg6: memref<1x128xf32, #tpu.memory_space<vmem>>, %arg7: memref<16x128xf32, #tpu.memory_space<vmem>>, %arg8: memref<16x128xf32, #tpu.memory_space<vmem>>, %arg9: memref<128x128xf32, #tpu.memory_space<vmem>>) attributes {dimension_semantics = [#tpu.dimension_semantics<arbitrary>], iteration_bounds = array<i64: 1>, scalar_prefetch = 0 : i64, scratch_operands = 2 : i64, tpu.core_type = #tpu.core_type<tc>, window_params = [{transform_indices = @transform_0, window_bounds = array<i64: 128, 16>}, {pipeline_mode = #tpu.pipeline_mode<synchronous>, transform_indices = @transform_1, window_bounds = array<i64: 16, 128>}, {pipeline_mode = #tpu.pipeline_mode<synchronous>, transform_indices = @transform_2, window_bounds = array<i64: 128, 128>}, {pipeline_mode = #tpu.pipeline_mode<synchronous>, transform_indices = @transform_3, window_bounds = array<i64: 1, 128>}, {pipeline_mode = #tpu.pipeline_mode<synchronous>, transform_indices = @transform_4, window_bounds = array<i64: 128, 128>}, {pipeline_mode = #tpu.pipeline_mode<synchronous>, transform_indices = @transform_5, window_bounds = array<i64: 1, 128>}, {pipeline_mode = #tpu.pipeline_mode<synchronous>, transform_indices = @transform_6, window_bounds = array<i64: 16, 128>}]} {
    %c0_i32 = arith.constant 0 : i32
    %0 = arith.cmpi eq, %arg0, %c0_i32 : i32
    %1 = arith.extui %0 : i1 to i32
    %c0_i32_0 = arith.constant 0 : i32
    %2 = arith.cmpi ne, %1, %c0_i32_0 : i32
    scf.if %2 {
      %cst_40 = arith.constant 0.000000e+00 : f32
      %80 = vector.broadcast %cst_40 : f32 to vector<16x128xf32>
      %c0_41 = arith.constant 0 : index
      %c0_42 = arith.constant 0 : index
      %81 = vector.load %arg8[%c0_41, %c0_42] : memref<16x128xf32, #tpu.memory_space<vmem>>, vector<16x128xf32>
      tpu.vector_store %arg8[%c0_41, %c0_42], %80 {strides = array<i32>} : memref<16x128xf32, #tpu.memory_space<vmem>>, vector<16x128xf32>,
    } else {
    }
    %c0 = arith.constant 0 : index
    %c0_1 = arith.constant 0 : index
    %3 = vector.load %arg1[%c0, %c0_1] : memref<128x16xbf16, #tpu.memory_space<vmem>>, vector<128x16xbf16>
    %c0_2 = arith.constant 0 : index
    %c0_3 = arith.constant 0 : index
    %4 = vector.load %arg2[%c0_2, %c0_3] : memref<16x128xbf16, #tpu.memory_space<vmem>>, vector<16x128xbf16>
    %cst = arith.constant dense<0.000000e+00> : vector<128x128xf32>
    %5 = tpu.matmul %3, %4, %cst {dimension_numbers = #tpu.dot_dimension_numbers<[1], [0], [0], [1], [0, 0, 1, 1], [], []>} : vector<128x16xbf16>, vector<16x128xbf16>, vector<128x128xf32> -> vector<128x128xf32>
    %c0_4 = arith.constant 0 : index
    %c0_5 = arith.constant 0 : index
    %6 = vector.load %arg4[%c0_4, %c0_5] : memref<1x128xf32, #tpu.memory_space<vmem>>, vector<1x128xf32>
    %7 = vector.broadcast %6 : vector<1x128xf32> to vector<128x128xf32>
    %8 = arith.addf %5, %7 : vector<128x128xf32>
    %c0_6 = arith.constant 0 : index
    %c0_7 = arith.constant 0 : index
    %9 = vector.load %arg9[%c0_6, %c0_7] : memref<128x128xf32, #tpu.memory_space<vmem>>, vector<128x128xf32>
    tpu.vector_store %arg9[%c0_6, %c0_7], %8 {strides = array<i32>} : memref<128x128xf32, #tpu.memory_space<vmem>>, vector<128x128xf32>,
    %c0_8 = arith.constant 0 : index
    %c0_9 = arith.constant 0 : index
    %10 = vector.load %arg3[%c0_8, %c0_9] : memref<128x128xbf16, #tpu.memory_space<vmem>>, vector<128x128xbf16>
    %c0_10 = arith.constant 0 : index
    %c0_11 = arith.constant 0 : index
    %11 = vector.load %arg8[%c0_10, %c0_11] : memref<16x128xf32, #tpu.memory_space<vmem>>, vector<16x128xf32>
    %c0_i32_12 = arith.constant 0 : i32
    %c16_i32 = arith.constant 16 : i32
    %12 = arith.muli %c0_i32_12, %c16_i32 : i32
    %13 = tpu.assume_multiple %12, 16 : i32
    %14 = arith.index_cast %13 : i32 to index
    %c0_13 = arith.constant 0 : index
    %15 = vector.load %arg9[%14, %c0_13] : memref<128x128xf32, #tpu.memory_space<vmem>>, vector<16x128xf32>
    %16 = arith.truncf %11 : vector<16x128xf32> to vector<16x128xbf16>
    %cst_14 = arith.constant dense<0.000000e+00> : vector<16x128xf32>
    %17 = tpu.matmul %16, %10, %cst_14 {dimension_numbers = #tpu.dot_dimension_numbers<[1], [0], [0], [1], [0, 0, 1, 1], [], []>} : vector<16x128xbf16>, vector<128x128xbf16>, vector<16x128xf32> -> vector<16x128xf32>
    %18 = arith.addf %15, %17 : vector<16x128xf32>
    %19 = math.tanh %18 : vector<16x128xf32>
    %c1_i32 = arith.constant 1 : i32
    %c16_i32_15 = arith.constant 16 : i32
    %20 = arith.muli %c1_i32, %c16_i32_15 : i32
    %21 = tpu.assume_multiple %20, 16 : i32
    %22 = arith.index_cast %21 : i32 to index
    %c0_16 = arith.constant 0 : index
    %23 = vector.load %arg9[%22, %c0_16] : memref<128x128xf32, #tpu.memory_space<vmem>>, vector<16x128xf32>
    %24 = arith.truncf %19 : vector<16x128xf32> to vector<16x128xbf16>
    %cst_17 = arith.constant dense<0.000000e+00> : vector<16x128xf32>
    %25 = tpu.matmul %24, %10, %cst_17 {dimension_numbers = #tpu.dot_dimension_numbers<[1], [0], [0], [1], [0, 0, 1, 1], [], []>} : vector<16x128xbf16>, vector<128x128xbf16>, vector<16x128xf32> -> vector<16x128xf32>
    %26 = arith.addf %23, %25 : vector<16x128xf32>
    %27 = math.tanh %26 : vector<16x128xf32>
    %c2_i32 = arith.constant 2 : i32
    %c16_i32_18 = arith.constant 16 : i32
    %28 = arith.muli %c2_i32, %c16_i32_18 : i32
    %29 = tpu.assume_multiple %28, 16 : i32
    %30 = arith.index_cast %29 : i32 to index
    %c0_19 = arith.constant 0 : index
    %31 = vector.load %arg9[%30, %c0_19] : memref<128x128xf32, #tpu.memory_space<vmem>>, vector<16x128xf32>
    %32 = arith.truncf %27 : vector<16x128xf32> to vector<16x128xbf16>
    %cst_20 = arith.constant dense<0.000000e+00> : vector<16x128xf32>
    %33 = tpu.matmul %32, %10, %cst_20 {dimension_numbers = #tpu.dot_dimension_numbers<[1], [0], [0], [1], [0, 0, 1, 1], [], []>} : vector<16x128xbf16>, vector<128x128xbf16>, vector<16x128xf32> -> vector<16x128xf32>
    %34 = arith.addf %31, %33 : vector<16x128xf32>
    %35 = math.tanh %34 : vector<16x128xf32>
    %c3_i32 = arith.constant 3 : i32
    %c16_i32_21 = arith.constant 16 : i32
    %36 = arith.muli %c3_i32, %c16_i32_21 : i32
    %37 = tpu.assume_multiple %36, 16 : i32
    %38 = arith.index_cast %37 : i32 to index
    %c0_22 = arith.constant 0 : index
    %39 = vector.load %arg9[%38, %c0_22] : memref<128x128xf32, #tpu.memory_space<vmem>>, vector<16x128xf32>
    %40 = arith.truncf %35 : vector<16x128xf32> to vector<16x128xbf16>
    %cst_23 = arith.constant dense<0.000000e+00> : vector<16x128xf32>
    %41 = tpu.matmul %40, %10, %cst_23 {dimension_numbers = #tpu.dot_dimension_numbers<[1], [0], [0], [1], [0, 0, 1, 1], [], []>} : vector<16x128xbf16>, vector<128x128xbf16>, vector<16x128xf32> -> vector<16x128xf32>
    %42 = arith.addf %39, %41 : vector<16x128xf32>
    %43 = math.tanh %42 : vector<16x128xf32>
    %c4_i32 = arith.constant 4 : i32
    %c16_i32_24 = arith.constant 16 : i32
    %44 = arith.muli %c4_i32, %c16_i32_24 : i32
    %45 = tpu.assume_multiple %44, 16 : i32
    %46 = arith.index_cast %45 : i32 to index
    %c0_25 = arith.constant 0 : index
    %47 = vector.load %arg9[%46, %c0_25] : memref<128x128xf32, #tpu.memory_space<vmem>>, vector<16x128xf32>
    %48 = arith.truncf %43 : vector<16x128xf32> to vector<16x128xbf16>
    %cst_26 = arith.constant dense<0.000000e+00> : vector<16x128xf32>
    %49 = tpu.matmul %48, %10, %cst_26 {dimension_numbers = #tpu.dot_dimension_numbers<[1], [0], [0], [1], [0, 0, 1, 1], [], []>} : vector<16x128xbf16>, vector<128x128xbf16>, vector<16x128xf32> -> vector<16x128xf32>
    %50 = arith.addf %47, %49 : vector<16x128xf32>
    %51 = math.tanh %50 : vector<16x128xf32>
    %c5_i32 = arith.constant 5 : i32
    %c16_i32_27 = arith.constant 16 : i32
    %52 = arith.muli %c5_i32, %c16_i32_27 : i32
    %53 = tpu.assume_multiple %52, 16 : i32
    %54 = arith.index_cast %53 : i32 to index
    %c0_28 = arith.constant 0 : index
    %55 = vector.load %arg9[%54, %c0_28] : memref<128x128xf32, #tpu.memory_space<vmem>>, vector<16x128xf32>
    %56 = arith.truncf %51 : vector<16x128xf32> to vector<16x128xbf16>
    %cst_29 = arith.constant dense<0.000000e+00> : vector<16x128xf32>
    %57 = tpu.matmul %56, %10, %cst_29 {dimension_numbers = #tpu.dot_dimension_numbers<[1], [0], [0], [1], [0, 0, 1, 1], [], []>} : vector<16x128xbf16>, vector<128x128xbf16>, vector<16x128xf32> -> vector<16x128xf32>
    %58 = arith.addf %55, %57 : vector<16x128xf32>
    %59 = math.tanh %58 : vector<16x128xf32>
    %c6_i32 = arith.constant 6 : i32
    %c16_i32_30 = arith.constant 16 : i32
    %60 = arith.muli %c6_i32, %c16_i32_30 : i32
    %61 = tpu.assume_multiple %60, 16 : i32
    %62 = arith.index_cast %61 : i32 to index
    %c0_31 = arith.constant 0 : index
    %63 = vector.load %arg9[%62, %c0_31] : memref<128x128xf32, #tpu.memory_space<vmem>>, vector<16x128xf32>
    %64 = arith.truncf %59 : vector<16x128xf32> to vector<16x128xbf16>
    %cst_32 = arith.constant dense<0.000000e+00> : vector<16x128xf32>
    %65 = tpu.matmul %64, %10, %cst_32 {dimension_numbers = #tpu.dot_dimension_numbers<[1], [0], [0], [1], [0, 0, 1, 1], [], []>} : vector<16x128xbf16>, vector<128x128xbf16>, vector<16x128xf32> -> vector<16x128xf32>
    %66 = arith.addf %63, %65 : vector<16x128xf32>
    %67 = math.tanh %66 : vector<16x128xf32>
    %c7_i32 = arith.constant 7 : i32
    %c16_i32_33 = arith.constant 16 : i32
    %68 = arith.muli %c7_i32, %c16_i32_33 : i32
    %69 = tpu.assume_multiple %68, 16 : i32
    %70 = arith.index_cast %69 : i32 to index
    %c0_34 = arith.constant 0 : index
    %71 = vector.load %arg9[%70, %c0_34] : memref<128x128xf32, #tpu.memory_space<vmem>>, vector<16x128xf32>
    %72 = arith.truncf %67 : vector<16x128xf32> to vector<16x128xbf16>
    %cst_35 = arith.constant dense<0.000000e+00> : vector<16x128xf32>
    %73 = tpu.matmul %72, %10, %cst_35 {dimension_numbers = #tpu.dot_dimension_numbers<[1], [0], [0], [1], [0, 0, 1, 1], [], []>} : vector<16x128xbf16>, vector<128x128xbf16>, vector<16x128xf32> -> vector<16x128xf32>
    %74 = arith.addf %71, %73 : vector<16x128xf32>
    %75 = math.tanh %74 : vector<16x128xf32>
    %c8_i32 = arith.constant 8 : i32
    %c0_36 = arith.constant 0 : index
    %c0_37 = arith.constant 0 : index
    %76 = vector.load %arg8[%c0_36, %c0_37] : memref<16x128xf32, #tpu.memory_space<vmem>>, vector<16x128xf32>
    tpu.vector_store %arg8[%c0_36, %c0_37], %75 {strides = array<i32>} : memref<16x128xf32, #tpu.memory_space<vmem>>, vector<16x128xf32>,
    %c0_i32_38 = arith.constant 0 : i32
    %77 = arith.cmpi eq, %arg0, %c0_i32_38 : i32
    %78 = arith.extui %77 : i1 to i32
    %c0_i32_39 = arith.constant 0 : i32
    %79 = arith.cmpi ne, %78, %c0_i32_39 : i32
    scf.if %79 {
      %c0_40 = arith.constant 0 : index
      %c0_41 = arith.constant 0 : index
      %80 = vector.load %arg8[%c0_40, %c0_41] : memref<16x128xf32, #tpu.memory_space<vmem>>, vector<16x128xf32>
      %81 = arith.truncf %80 : vector<16x128xf32> to vector<16x128xbf16>
      %c0_42 = arith.constant 0 : index
      %c0_43 = arith.constant 0 : index
      %82 = vector.load %arg5[%c0_42, %c0_43] : memref<128x128xbf16, #tpu.memory_space<vmem>>, vector<128x128xbf16>
      %cst_44 = arith.constant dense<0.000000e+00> : vector<16x128xf32>
      %83 = tpu.matmul %81, %82, %cst_44 {dimension_numbers = #tpu.dot_dimension_numbers<[1], [0], [0], [1], [0, 0, 1, 1], [], []>} : vector<16x128xbf16>, vector<128x128xbf16>, vector<16x128xf32> -> vector<16x128xf32>
      %c0_45 = arith.constant 0 : index
      %c0_46 = arith.constant 0 : index
      %84 = vector.load %arg6[%c0_45, %c0_46] : memref<1x128xf32, #tpu.memory_space<vmem>>, vector<1x128xf32>
      %85 = vector.broadcast %84 : vector<1x128xf32> to vector<16x128xf32>
      %86 = arith.addf %83, %85 : vector<16x128xf32>
      %c0_47 = arith.constant 0 : index
      %c0_48 = arith.constant 0 : index
      %87 = vector.load %arg7[%c0_47, %c0_48] : memref<16x128xf32, #tpu.memory_space<vmem>>, vector<16x128xf32>
      tpu.vector_store %arg7[%c0_47, %c0_48], %86 {strides = array<i32>} : memref<16x128xf32, #tpu.memory_space<vmem>>, vector<16x128xf32>,
    } else {
    }
    return
  }
  func.func @transform_0(%arg0: i32) -> (i32, i32) {
    %c0_i32 = arith.constant 0 : i32
    %c0_i32_0 = arith.constant 0 : i32
    return %arg0, %c0_i32 : i32, i32
  }
  func.func @transform_1(%arg0: i32) -> (i32, i32) {
    %c0_i32 = arith.constant 0 : i32
    %c0_i32_0 = arith.constant 0 : i32
    %c0_i32_1 = arith.constant 0 : i32
    return %c0_i32, %c0_i32_0 : i32, i32
  }
  func.func @transform_2(%arg0: i32) -> (i32, i32) {
    %c0_i32 = arith.constant 0 : i32
    %c0_i32_0 = arith.constant 0 : i32
    %c0_i32_1 = arith.constant 0 : i32
    return %c0_i32, %c0_i32_0 : i32, i32
  }
  func.func @transform_3(%arg0: i32) -> (i32, i32) {
    %c0_i32 = arith.constant 0 : i32
    %c0_i32_0 = arith.constant 0 : i32
    %c0_i32_1 = arith.constant 0 : i32
    return %c0_i32, %c0_i32_0 : i32, i32
  }
  func.func @transform_4(%arg0: i32) -> (i32, i32) {
    %c0_i32 = arith.constant 0 : i32
    %c0_i32_0 = arith.constant 0 : i32
    %c0_i32_1 = arith.constant 0 : i32
    return %c0_i32, %c0_i32_0 : i32, i32
  }
  func.func @transform_5(%arg0: i32) -> (i32, i32) {
    %c0_i32 = arith.constant 0 : i32
    %c0_i32_0 = arith.constant 0 : i32
    %c0_i32_1 = arith.constant 0 : i32
    return %c0_i32, %c0_i32_0 : i32, i32
  }
  func.func @transform_6(%arg0: i32) -> (i32, i32) {
    %c0_i32 = arith.constant 0 : i32
    %c0_i32_0 = arith.constant 0 : i32
    %c0_i32_1 = arith.constant 0 : i32
    return %c0_i32, %c0_i32_0 : i32, i32
  }
}

</mosaic_0001>

<llo_original>
// kernel: tpu_custom_call.1
$region0: #{tpu_custom_call.1}
  #allocation0 [shape = 'u32[]', space=smem, size = 0x4, offset = 0x4, fixed_abs, tag = 'smem constant byte address 0x4 - core index']
  #allocation1 [shape = 'u32[144,128]{1,0:T(1,128)}', space=vmem, size = 0x12000, scoped, tag = 'internal scratch']
  #allocation2 [shape = 'f32[16,128]{1,0:T(8,128)}', space=vmem, size = 0x2000, scoped, tag = 'scratch operand']
  #allocation3 [shape = 'f32[128,128]{1,0:T(8,128)}', space=vmem, size = 0x10000, scoped, tag = 'scratch operand']
  %s0 = inlined_call_operand.vmem [shape: bf16[128,16], index: 0, kind: input, shape index: {}]
  %s1 = inlined_call_operand.vmem [shape: bf16[16,128], index: 1, kind: input, shape index: {}]
  %s2 = inlined_call_operand.vmem [shape: bf16[128,128], index: 2, kind: input, shape index: {}]
  %s3 = inlined_call_operand.vmem [shape: f32[1,128], index: 3, kind: input, shape index: {}]
  %s4 = inlined_call_operand.hbm [shape: bf16[128,128], index: 4, kind: input, shape index: {}]
  %s5 = inlined_call_operand.vmem [shape: f32[1,128], index: 5, kind: input, shape index: {}]
  %s6 = inlined_call_operand.hbm [shape: f32[16,128], index: 6, kind: output, shape index: {}]
  %s7 = sld [smem:[#allocation0]]
  $region46: #{tpu_custom_call.1} parent=0
    _
  %s9 = ssub.s32 1, %s7
  %s10 = scalar_select 0, %s9, %s7
  $region1: #{tpu_custom_call.1} parent=0
    #allocation4 [shape = 'u8[32768]{0}', space=vmem, size = 0x8000, scoped, tag = 'input window, operand 4, single buffered']
    #allocation5 [shape = 's32[1]{0}', space=sflag, size = 0x4, scoped, tag = 'scoped memory for tpu_custom_call.1']
    #allocation6 [shape = 's32[1]{0}', space=sflag, size = 0x4, scoped, tag = 'scoped memory for tpu_custom_call.1']
    #allocation7 [shape = 'u8[8192]{0}', space=vmem, size = 0x2000, scoped, tag = 'output window, operand 0, single buffered']
    %11 = vsyncpa [#allocation5], 0
    %12 = vsyncpa [#allocation6], 0
    // Predicated region
    $region2: #{tpu_custom_call.1} parent=1 // pred_check
      _
    $region3: #{tpu_custom_call.1} parent=1 // pred_check_branch
      %14 = sbr.rel (0) target = $region5
    $region4: #{tpu_custom_call.1} parent=1 // pred_region
      _
    $region5: #{tpu_custom_call.1} parent=1 // pred_fallthru
      _
    // Predicated region
    $region6: #{tpu_custom_call.1} parent=1 // pred_check
      _
    $region7: #{tpu_custom_call.1} parent=1 // pred_check_branch
      %16 = sbr.rel (0) target = $region9
    $region8: #{tpu_custom_call.1} parent=1 // pred_region
      _
    $region9: #{tpu_custom_call.1} parent=1 // pred_fallthru
      _
    // Predicated region
    $region10: #{tpu_custom_call.1} parent=1 // pred_check
      _
    $region11: #{tpu_custom_call.1} parent=1 // pred_check_branch
      %18 = sbr.rel (0) target = $region13
    $region12: #{tpu_custom_call.1} parent=1 // pred_region
      _
    $region13: #{tpu_custom_call.1} parent=1 // pred_fallthru
      _
    // Predicated region
    $region14: #{tpu_custom_call.1} parent=1 // pred_check
      _
    $region15: #{tpu_custom_call.1} parent=1 // pred_check_branch
      %20 = sbr.rel (0) target = $region17
    $region16: #{tpu_custom_call.1} parent=1 // pred_region
      _
    $region17: #{tpu_custom_call.1} parent=1 // pred_fallthru
      _
    // Predicated region
    $region18: #{tpu_custom_call.1} parent=1 // pred_check
      _
    $region19: #{tpu_custom_call.1} parent=1 // pred_check_branch
      %22 = sbr.rel (0) target = $region21
    $region20: #{tpu_custom_call.1} parent=1 // pred_region
      %s24 = ssub.s32 1024, 1024
      %25 = vsyncadd [#allocation5], %s24
      %s26 = sshll.u32 [#allocation4], 4
      %s27 = int_to_ptr.vmem [resolvable:$true] %s26
      %32 = dma.hbm_to_vmem [thread:$0]  %s4, 1024, %s27, [#allocation5], 64, 64, 4
    $region21: #{tpu_custom_call.1} parent=1 // pred_fallthru
      _
    // Predicated region
    $region22: #{tpu_custom_call.1} parent=1 // pred_check
      _
    $region23: #{tpu_custom_call.1} parent=1 // pred_check_branch
      %34 = sbr.rel (0) target = $region25
    $region24: #{tpu_custom_call.1} parent=1 // pred_region
      _
    $region25: #{tpu_custom_call.1} parent=1 // pred_fallthru
      _
    // Predicated region
    $region26: #{tpu_custom_call.1} parent=1 // pred_check
      _
    $region27: #{tpu_custom_call.1} parent=1 // pred_check_branch
      %36 = sbr.rel (0) target = $region29
    $region28: #{tpu_custom_call.1} parent=1 // pred_region
      %37 = dma.done [#allocation5], 1024
    $region29: #{tpu_custom_call.1} parent=1 // pred_fallthru
      _
    %p39 = scmp.eq.s32.totalorder 0, 0
    // Predicated region
    $region30: #{tpu_custom_call.1} parent=1 // pred_check
      %p40 = pneg %p39
    $region31: #{tpu_custom_call.1} parent=1 // pred_check_branch
      %42 = sbr.rel (%p40) target = $region33
    $region32: #{tpu_custom_call.1} parent=1 // pred_region
      %43 = vst [vmem:[#allocation2] sm:$0xff] 0.0
      %44 = vst [vmem:[#allocation2 + $0x8] sm:$0xff] 0.0
    $region33: #{tpu_custom_call.1} parent=1 // pred_fallthru
      _
    %v45 = vld [vmem:[%s0] sm:$0xf]
    %v46 = vld [vmem:[%s0 + $0x4] sm:$0xf]
    %v47 = vld [vmem:[%s0 + $0x8] sm:$0xf]
    %v48 = vld [vmem:[%s0 + $0xc] sm:$0xf]
    %v49 = vld [vmem:[%s0 + $0x10] sm:$0xf]
    %v50 = vld [vmem:[%s0 + $0x14] sm:$0xf]
    %v51 = vld [vmem:[%s0 + $0x18] sm:$0xf]
    %v52 = vld [vmem:[%s0 + $0x1c] sm:$0xf]
    %v53 = vld [vmem:[%s0 + $0x20] sm:$0xf]
    %v54 = vld [vmem:[%s0 + $0x24] sm:$0xf]
    %v55 = vld [vmem:[%s0 + $0x28] sm:$0xf]
    %v56 = vld [vmem:[%s0 + $0x2c] sm:$0xf]
    %v57 = vld [vmem:[%s0 + $0x30] sm:$0xf]
    %v58 = vld [vmem:[%s0 + $0x34] sm:$0xf]
    %v59 = vld [vmem:[%s0 + $0x38] sm:$0xf]
    %v60 = vld [vmem:[%s0 + $0x3c] sm:$0xf]
    %v61 = vld [vmem:[%s1] sm:$0xf]
    %v62 = vld [vmem:[%s1 + $0x4] sm:$0xf]
    %v63 = vld [vmem:[%s3] sm:$0x1]
    %v65 = vlaneseq
    %v66 = vshrl.u32 %v65, 7
    %v67 = vsub.s32 0, %v66
    %v68 = vrot.slane %v63, %v67
    %v86 = vunpack.c.l.b16 %v45
    %v87 = vunpack.c.l.b16 %v46
    %v88 = vunpack.c.l.b16 %v47
    %v89 = vunpack.c.l.b16 %v48
    %v90 = vunpack.c.l.b16 %v49
    %v91 = vunpack.c.l.b16 %v50
    %v92 = vunpack.c.l.b16 %v51
    %v93 = vunpack.c.l.b16 %v52
    %v94 = vunpack.c.l.b16 %v53
    %v95 = vunpack.c.l.b16 %v54
    %v96 = vunpack.c.l.b16 %v55
    %v97 = vunpack.c.l.b16 %v56
    %v98 = vunpack.c.l.b16 %v57
    %v99 = vunpack.c.l.b16 %v58
    %v100 = vunpack.c.l.b16 %v59
    %v101 = vunpack.c.l.b16 %v60
    %v102 = vpack.c.b16 %v87, %v86
    %v103 = vpack.c.b16 %v89, %v88
    %v104 = vpack.c.b16 %v91, %v90
    %v105 = vpack.c.b16 %v93, %v92
    %v106 = vpack.c.b16 %v95, %v94
    %v107 = vpack.c.b16 %v97, %v96
    %v108 = vpack.c.b16 %v99, %v98
    %v109 = vpack.c.b16 %v101, %v100
    %v112 = vunpack.c.l.b16 %v61
    %v113 = vunpack.c.l.b16 %v62
    %v114 = vpack.c.b16 %v113, %v112
    %vm116 = vcmask 130048
    %v118 = vsel %vm116, %v102, 0
    %v121 = vsel %vm116, %v103, 0
    %v124 = vsel %vm116, %v104, 0
    %v127 = vsel %vm116, %v105, 0
    %v130 = vsel %vm116, %v106, 0
    %v133 = vsel %vm116, %v107, 0
    %v136 = vsel %vm116, %v108, 0
    %v139 = vsel %vm116, %v109, 0
    %141 = vmatprep.subr.bf16.mxu0 0
    %142 = vmatpush1.bf16.msra.mxu0 %v114
    %143 = vmatprep.subr.bf16.mxu0 0
    %144 = vmatpush1.bf16.msra.mxu0 0
    %145 = vmatprep.subr.bf16.mxu0 0
    %146 = vmatpush1.bf16.msra.mxu0 0
    %147 = vmatprep.subr.bf16.mxu0 0
    %148 = vmatpush1.bf16.msra.mxu0 0
    %149 = vmatprep.subr.bf16.mxu0 0
    %150 = vmatpush1.bf16.msra.mxu0 0
    %151 = vmatprep.subr.bf16.mxu0 0
    %152 = vmatpush1.bf16.msra.mxu0 0
    %153 = vmatprep.subr.bf16.mxu0 0
    %154 = vmatpush1.bf16.msra.mxu0 0
    %155 = vmatprep.subr.bf16.mxu0 0
    %156 = vmatpush1.bf16.msra.mxu0 0
    %157 = vmatprep.subr.bf16.mxu0 0
    %158 = vmatpush1.bf16.msra.mxu0 0
    %159 = vmatprep.subr.bf16.mxu0 0
    %160 = vmatpush1.bf16.msra.mxu0 0
    %161 = vmatprep.subr.bf16.mxu0 0
    %162 = vmatpush1.bf16.msra.mxu0 0
    %163 = vmatprep.subr.bf16.mxu0 0
    %164 = vmatpush1.bf16.msra.mxu0 0
    %165 = vmatprep.subr.bf16.mxu0 0
    %166 = vmatpush1.bf16.msra.mxu0 0
    %167 = vmatprep.subr.bf16.mxu0 0
    %168 = vmatpush1.bf16.msra.mxu0 0
    %169 = vmatprep.subr.bf16.mxu0 0
    %170 = vmatpush1.bf16.msra.mxu0 0
    %171 = vmatprep.subr.bf16.mxu0 0
    %172 = vmatpush1.bf16.msra.mxu0 0
    %173 = vmatprep.mubr.bf16.mxu0 0
    %174 = vmatmul.mubr.bf16.gmra.mrb[0].mxu0 %v118
    %v175 = vpop.f32.mrb[0].mxu0
    %v176 = vadd.f32 %v68, %v175
    %v177 = vpop.f32.mrb[0].mxu0
    %v178 = vpop.f32.mrb[0].mxu0
    %v179 = vadd.f32 %v68, %v178
    %v180 = vpop.f32.mrb[0].mxu0
    %181 = vmatprep.mubr.bf16.mxu0 0
    %182 = vmatmul.mubr.bf16.gmra.mrb[0].mxu0 %v121
    %v183 = vpop.f32.mrb[0].mxu0
    %v184 = vadd.f32 %v68, %v183
    %v185 = vpop.f32.mrb[0].mxu0
    %v186 = vpop.f32.mrb[0].mxu0
    %v187 = vadd.f32 %v68, %v186
    %v188 = vpop.f32.mrb[0].mxu0
    %189 = vmatprep.mubr.bf16.mxu0 0
    %190 = vmatmul.mubr.bf16.gmra.mrb[0].mxu0 %v124
    %v191 = vpop.f32.mrb[0].mxu0
    %v192 = vadd.f32 %v68, %v191
    %v193 = vpop.f32.mrb[0].mxu0
    %v194 = vpop.f32.mrb[0].mxu0
    %v195 = vadd.f32 %v68, %v194
    %v196 = vpop.f32.mrb[0].mxu0
    %197 = vmatprep.mubr.bf16.mxu0 0
    %198 = vmatmul.mubr.bf16.gmra.mrb[0].mxu0 %v127
    %v199 = vpop.f32.mrb[0].mxu0
    %v200 = vadd.f32 %v68, %v199
    %v201 = vpop.f32.mrb[0].mxu0
    %v202 = vpop.f32.mrb[0].mxu0
    %v203 = vadd.f32 %v68, %v202
    %v204 = vpop.f32.mrb[0].mxu0
    %205 = vmatprep.mubr.bf16.mxu0 0
    %206 = vmatmul.mubr.bf16.gmra.mrb[0].mxu0 %v130
    %v207 = vpop.f32.mrb[0].mxu0
    %v208 = vadd.f32 %v68, %v207
    %v209 = vpop.f32.mrb[0].mxu0
    %v210 = vpop.f32.mrb[0].mxu0
    %v211 = vadd.f32 %v68, %v210
    %v212 = vpop.f32.mrb[0].mxu0
    %213 = vmatprep.mubr.bf16.mxu0 0
    %214 = vmatmul.mubr.bf16.gmra.mrb[0].mxu0 %v133
    %v215 = vpop.f32.mrb[0].mxu0
    %v216 = vadd.f32 %v68, %v215
    %v217 = vpop.f32.mrb[0].mxu0
    %v218 = vpop.f32.mrb[0].mxu0
    %v219 = vadd.f32 %v68, %v218
    %v220 = vpop.f32.mrb[0].mxu0
    %221 = vmatprep.mubr.bf16.mxu0 0
    %222 = vmatmul.mubr.bf16.gmra.mrb[0].mxu0 %v136
    %v223 = vpop.f32.mrb[0].mxu0
    %v224 = vadd.f32 %v68, %v223
    %v225 = vpop.f32.mrb[0].mxu0
    %v226 = vpop.f32.mrb[0].mxu0
    %v227 = vadd.f32 %v68, %v226
    %v228 = vpop.f32.mrb[0].mxu0
    %229 = vmatprep.mubr.bf16.mxu0 0
    %230 = vmatmul.mubr.bf16.gmra.mrb[0].mxu0 %v139
    %v231 = vpop.f32.mrb[0].mxu0
    %v232 = vadd.f32 %v68, %v231
    %v233 = vpop.f32.mrb[0].mxu0
    %v234 = vpop.f32.mrb[0].mxu0
    %v235 = vadd.f32 %v68, %v234
    %v236 = vpop.f32.mrb[0].mxu0
    %237 = vdwg.mxu0
    %238 = vst [vmem:[#allocation3] sm:$0xff] %v176
    %239 = vst [vmem:[#allocation3 + $0x8] sm:$0xff] %v179
    %240 = vst [vmem:[#allocation3 + $0x10] sm:$0xff] %v184
    %241 = vst [vmem:[#allocation3 + $0x18] sm:$0xff] %v187
    %242 = vst [vmem:[#allocation3 + $0x20] sm:$0xff] %v192
    %243 = vst [vmem:[#allocation3 + $0x28] sm:$0xff] %v195
    %244 = vst [vmem:[#allocation3 + $0x30] sm:$0xff] %v200
    %245 = vst [vmem:[#allocation3 + $0x38] sm:$0xff] %v203
    %246 = vst [vmem:[#allocation3 + $0x40] sm:$0xff] %v208
    %247 = vst [vmem:[#allocation3 + $0x48] sm:$0xff] %v211
    %248 = vst [vmem:[#allocation3 + $0x50] sm:$0xff] %v216
    %249 = vst [vmem:[#allocation3 + $0x58] sm:$0xff] %v219
    %250 = vst [vmem:[#allocation3 + $0x60] sm:$0xff] %v224
    %251 = vst [vmem:[#allocation3 + $0x68] sm:$0xff] %v227
    %252 = vst [vmem:[#allocation3 + $0x70] sm:$0xff] %v232
    %253 = vst [vmem:[#allocation3 + $0x78] sm:$0xff] %v235
    %v254 = vld [vmem:[%s2] sm:$0xf]
    %v255 = vld [vmem:[%s2 + $0x4] sm:$0xf]
    %v256 = vld [vmem:[%s2 + $0x8] sm:$0xf]
    %v257 = vld [vmem:[%s2 + $0xc] sm:$0xf]
    %v258 = vld [vmem:[%s2 + $0x10] sm:$0xf]
    %v259 = vld [vmem:[%s2 + $0x14] sm:$0xf]
    %v260 = vld [vmem:[%s2 + $0x18] sm:$0xf]
    %v261 = vld [vmem:[%s2 + $0x1c] sm:$0xf]
    %v262 = vld [vmem:[%s2 + $0x20] sm:$0xf]
    %v263 = vld [vmem:[%s2 + $0x24] sm:$0xf]
    %v264 = vld [vmem:[%s2 + $0x28] sm:$0xf]
    %v265 = vld [vmem:[%s2 + $0x2c] sm:$0xf]
    %v266 = vld [vmem:[%s2 + $0x30] sm:$0xf]
    %v267 = vld [vmem:[%s2 + $0x34] sm:$0xf]
    %v268 = vld [vmem:[%s2 + $0x38] sm:$0xf]
    %v269 = vld [vmem:[%s2 + $0x3c] sm:$0xf]
    %v270 = vld [vmem:[#allocation2] sm:$0xff]
    %v271 = vld [vmem:[#allocation2 + $0x8] sm:$0xff]
    %v272 = vld [vmem:[#allocation3] sm:$0xff]
    %v273 = vld [vmem:[#allocation3 + $0x8] sm:$0xff]
    %v274 = vpack.c.bf16 %v271, %v270
    %v291 = vunpack.c.l.b16 %v254
    %v292 = vunpack.c.l.b16 %v255
    %v293 = vunpack.c.l.b16 %v256
    %v294 = vunpack.c.l.b16 %v257
    %v295 = vunpack.c.l.b16 %v258
    %v296 = vunpack.c.l.b16 %v259
    %v297 = vunpack.c.l.b16 %v260
    %v298 = vunpack.c.l.b16 %v261
    %v299 = vunpack.c.l.b16 %v262
    %v300 = vunpack.c.l.b16 %v263
    %v301 = vunpack.c.l.b16 %v264
    %v302 = vunpack.c.l.b16 %v265
    %v303 = vunpack.c.l.b16 %v266
    %v304 = vunpack.c.l.b16 %v267
    %v305 = vunpack.c.l.b16 %v268
    %v306 = vunpack.c.l.b16 %v269
    %v307 = vpack.c.b16 %v292, %v291
    %v308 = vpack.c.b16 %v294, %v293
    %v309 = vpack.c.b16 %v296, %v295
    %v310 = vpack.c.b16 %v298, %v297
    %v311 = vpack.c.b16 %v300, %v299
    %v312 = vpack.c.b16 %v302, %v301
    %v313 = vpack.c.b16 %v304, %v303
    %v314 = vpack.c.b16 %v306, %v305
    %323 = vmatprep.subr.bf16.mxu0 0
    %324 = vmatpush1.bf16.msra.mxu0 %v307
    %325 = vmatprep.subr.bf16.mxu0 0
    %326 = vmatpush1.bf16.msra.mxu0 %v308
    %327 = vmatprep.subr.bf16.mxu0 0
    %328 = vmatpush1.bf16.msra.mxu0 %v309
    %329 = vmatprep.subr.bf16.mxu0 0
    %330 = vmatpush1.bf16.msra.mxu0 %v310
    %331 = vmatprep.subr.bf16.mxu0 0
    %332 = vmatpush1.bf16.msra.mxu0 %v311
    %333 = vmatprep.subr.bf16.mxu0 0
    %334 = vmatpush1.bf16.msra.mxu0 %v312
    %335 = vmatprep.subr.bf16.mxu0 0
    %336 = vmatpush1.bf16.msra.mxu0 %v313
    %337 = vmatprep.subr.bf16.mxu0 0
    %338 = vmatpush1.bf16.msra.mxu0 %v314
    %339 = vmatprep.subr.bf16.mxu0 0
    %340 = vmatpush1.bf16.msra.mxu0 0
    %341 = vmatprep.subr.bf16.mxu0 0
    %342 = vmatpush1.bf16.msra.mxu0 0
    %343 = vmatprep.subr.bf16.mxu0 0
    %344 = vmatpush1.bf16.msra.mxu0 0
    %345 = vmatprep.subr.bf16.mxu0 0
    %346 = vmatpush1.bf16.msra.mxu0 0
    %347 = vmatprep.subr.bf16.mxu0 0
    %348 = vmatpush1.bf16.msra.mxu0 0
    %349 = vmatprep.subr.bf16.mxu0 0
    %350 = vmatpush1.bf16.msra.mxu0 0
    %351 = vmatprep.subr.bf16.mxu0 0
    %352 = vmatpush1.bf16.msra.mxu0 0
    %353 = vmatprep.subr.bf16.mxu0 0
    %354 = vmatpush1.bf16.msra.mxu0 0
    %355 = vmatprep.mubr.bf16.mxu0 0
    %356 = vmatmul.mubr.bf16.gmra.mrb[0].mxu0 %v274
    %v357 = vpop.f32.mrb[0].mxu0
    %v358 = vadd.f32 0.0, %v357
    %v359 = vpop.f32.mrb[0].mxu0
    %v360 = vpop.f32.mrb[0].mxu0
    %v361 = vadd.f32 0.0, %v360
    %v362 = vpop.f32.mrb[0].mxu0
    %363 = vdwg.mxu0
    %v364 = vadd.f32 %v272, %v358
    %v365 = vadd.f32 %v273, %v361
    %v366 = vtanh.pop %v364
    %v367 = vtanh.pop %v365
    %s368 = scalar_lea.vmem [#allocation3], 16
    %v369 = vld [vmem:[%s368] sm:$0xff]
    %v370 = vld [vmem:[%s368 + $0x8] sm:$0xff]
    %v371 = vpack.c.bf16 %v367, %v366
    %372 = vmatprep.subr.bf16.mxu0 0
    %373 = vmatpush1.bf16.msra.mxu0 %v307
    %374 = vmatprep.subr.bf16.mxu0 0
    %375 = vmatpush1.bf16.msra.mxu0 %v308
    %376 = vmatprep.subr.bf16.mxu0 0
    %377 = vmatpush1.bf16.msra.mxu0 %v309
    %378 = vmatprep.subr.bf16.mxu0 0
    %379 = vmatpush1.bf16.msra.mxu0 %v310
    %380 = vmatprep.subr.bf16.mxu0 0
    %381 = vmatpush1.bf16.msra.mxu0 %v311
    %382 = vmatprep.subr.bf16.mxu0 0
    %383 = vmatpush1.bf16.msra.mxu0 %v312
    %384 = vmatprep.subr.bf16.mxu0 0
    %385 = vmatpush1.bf16.msra.mxu0 %v313
    %386 = vmatprep.subr.bf16.mxu0 0
    %387 = vmatpush1.bf16.msra.mxu0 %v314
    %388 = vmatprep.subr.bf16.mxu0 0
    %389 = vmatpush1.bf16.msra.mxu0 0
    %390 = vmatprep.subr.bf16.mxu0 0
    %391 = vmatpush1.bf16.msra.mxu0 0
    %392 = vmatprep.subr.bf16.mxu0 0
    %393 = vmatpush1.bf16.msra.mxu0 0
    %394 = vmatprep.subr.bf16.mxu0 0
    %395 = vmatpush1.bf16.msra.mxu0 0
    %396 = vmatprep.subr.bf16.mxu0 0
    %397 = vmatpush1.bf16.msra.mxu0 0
    %398 = vmatprep.subr.bf16.mxu0 0
    %399 = vmatpush1.bf16.msra.mxu0 0
    %400 = vmatprep.subr.bf16.mxu0 0
    %401 = vmatpush1.bf16.msra.mxu0 0
    %402 = vmatprep.subr.bf16.mxu0 0
    %403 = vmatpush1.bf16.msra.mxu0 0
    %404 = vmatprep.mubr.bf16.mxu0 0
    %405 = vmatmul.mubr.bf16.gmra.mrb[0].mxu0 %v371
    %v406 = vpop.f32.mrb[0].mxu0
    %v407 = vadd.f32 0.0, %v406
    %v408 = vpop.f32.mrb[0].mxu0
    %v409 = vpop.f32.mrb[0].mxu0
    %v410 = vadd.f32 0.0, %v409
    %v411 = vpop.f32.mrb[0].mxu0
    %412 = vdwg.mxu0
    %v413 = vadd.f32 %v369, %v407
    %v414 = vadd.f32 %v370, %v410
    %v415 = vtanh.pop %v413
    %v416 = vtanh.pop %v414
    %s417 = scalar_lea.vmem [#allocation3], 32
    %v418 = vld [vmem:[%s417] sm:$0xff]
    %v419 = vld [vmem:[%s417 + $0x8] sm:$0xff]
    %v420 = vpack.c.bf16 %v416, %v415
    %421 = vmatprep.subr.bf16.mxu0 0
    %422 = vmatpush1.bf16.msra.mxu0 %v307
    %423 = vmatprep.subr.bf16.mxu0 0
    %424 = vmatpush1.bf16.msra.mxu0 %v308
    %425 = vmatprep.subr.bf16.mxu0 0
    %426 = vmatpush1.bf16.msra.mxu0 %v309
    %427 = vmatprep.subr.bf16.mxu0 0
    %428 = vmatpush1.bf16.msra.mxu0 %v310
    %429 = vmatprep.subr.bf16.mxu0 0
    %430 = vmatpush1.bf16.msra.mxu0 %v311
    %431 = vmatprep.subr.bf16.mxu0 0
    %432 = vmatpush1.bf16.msra.mxu0 %v312
    %433 = vmatprep.subr.bf16.mxu0 0
    %434 = vmatpush1.bf16.msra.mxu0 %v313
    %435 = vmatprep.subr.bf16.mxu0 0
    %436 = vmatpush1.bf16.msra.mxu0 %v314
    %437 = vmatprep.subr.bf16.mxu0 0
    %438 = vmatpush1.bf16.msra.mxu0 0
    %439 = vmatprep.subr.bf16.mxu0 0
    %440 = vmatpush1.bf16.msra.mxu0 0
    %441 = vmatprep.subr.bf16.mxu0 0
    %442 = vmatpush1.bf16.msra.mxu0 0
    %443 = vmatprep.subr.bf16.mxu0 0
    %444 = vmatpush1.bf16.msra.mxu0 0
    %445 = vmatprep.subr.bf16.mxu0 0
    %446 = vmatpush1.bf16.msra.mxu0 0
    %447 = vmatprep.subr.bf16.mxu0 0
    %448 = vmatpush1.bf16.msra.mxu0 0
    %449 = vmatprep.subr.bf16.mxu0 0
    %450 = vmatpush1.bf16.msra.mxu0 0
    %451 = vmatprep.subr.bf16.mxu0 0
    %452 = vmatpush1.bf16.msra.mxu0 0
    %453 = vmatprep.mubr.bf16.mxu0 0
    %454 = vmatmul.mubr.bf16.gmra.mrb[0].mxu0 %v420
    %v455 = vpop.f32.mrb[0].mxu0
    %v456 = vadd.f32 0.0, %v455
    %v457 = vpop.f32.mrb[0].mxu0
    %v458 = vpop.f32.mrb[0].mxu0
    %v459 = vadd.f32 0.0, %v458
    %v460 = vpop.f32.mrb[0].mxu0
    %461 = vdwg.mxu0
    %v462 = vadd.f32 %v418, %v456
    %v463 = vadd.f32 %v419, %v459
    %v464 = vtanh.pop %v462
    %v465 = vtanh.pop %v463
    %s466 = scalar_lea.vmem [#allocation3], 48
    %v467 = vld [vmem:[%s466] sm:$0xff]
    %v468 = vld [vmem:[%s466 + $0x8] sm:$0xff]
    %v469 = vpack.c.bf16 %v465, %v464
    %470 = vmatprep.subr.bf16.mxu0 0
    %471 = vmatpush1.bf16.msra.mxu0 %v307
    %472 = vmatprep.subr.bf16.mxu0 0
    %473 = vmatpush1.bf16.msra.mxu0 %v308
    %474 = vmatprep.subr.bf16.mxu0 0
    %475 = vmatpush1.bf16.msra.mxu0 %v309
    %476 = vmatprep.subr.bf16.mxu0 0
    %477 = vmatpush1.bf16.msra.mxu0 %v310
    %478 = vmatprep.subr.bf16.mxu0 0
    %479 = vmatpush1.bf16.msra.mxu0 %v311
    %480 = vmatprep.subr.bf16.mxu0 0
    %481 = vmatpush1.bf16.msra.mxu0 %v312
    %482 = vmatprep.subr.bf16.mxu0 0
    %483 = vmatpush1.bf16.msra.mxu0 %v313
    %484 = vmatprep.subr.bf16.mxu0 0
    %485 = vmatpush1.bf16.msra.mxu0 %v314
    %486 = vmatprep.subr.bf16.mxu0 0
    %487 = vmatpush1.bf16.msra.mxu0 0
    %488 = vmatprep.subr.bf16.mxu0 0
    %489 = vmatpush1.bf16.msra.mxu0 0
    %490 = vmatprep.subr.bf16.mxu0 0
    %491 = vmatpush1.bf16.msra.mxu0 0
    %492 = vmatprep.subr.bf16.mxu0 0
    %493 = vmatpush1.bf16.msra.mxu0 0
    %494 = vmatprep.subr.bf16.mxu0 0
    %495 = vmatpush1.bf16.msra.mxu0 0
    %496 = vmatprep.subr.bf16.mxu0 0
    %497 = vmatpush1.bf16.msra.mxu0 0
    %498 = vmatprep.subr.bf16.mxu0 0
    %499 = vmatpush1.bf16.msra.mxu0 0
    %500 = vmatprep.subr.bf16.mxu0 0
    %501 = vmatpush1.bf16.msra.mxu0 0
    %502 = vmatprep.mubr.bf16.mxu0 0
    %503 = vmatmul.mubr.bf16.gmra.mrb[0].mxu0 %v469
    %v504 = vpop.f32.mrb[0].mxu0
    %v505 = vadd.f32 0.0, %v504
    %v506 = vpop.f32.mrb[0].mxu0
    %v507 = vpop.f32.mrb[0].mxu0
    %v508 = vadd.f32 0.0, %v507
    %v509 = vpop.f32.mrb[0].mxu0
    %510 = vdwg.mxu0
    %v511 = vadd.f32 %v467, %v505
    %v512 = vadd.f32 %v468, %v508
    %v513 = vtanh.pop %v511
    %v514 = vtanh.pop %v512
    %s515 = scalar_lea.vmem [#allocation3], 64
    %v516 = vld [vmem:[%s515] sm:$0xff]
    %v517 = vld [vmem:[%s515 + $0x8] sm:$0xff]
    %v518 = vpack.c.bf16 %v514, %v513
    %519 = vmatprep.subr.bf16.mxu0 0
    %520 = vmatpush1.bf16.msra.mxu0 %v307
    %521 = vmatprep.subr.bf16.mxu0 0
    %522 = vmatpush1.bf16.msra.mxu0 %v308
    %523 = vmatprep.subr.bf16.mxu0 0
    %524 = vmatpush1.bf16.msra.mxu0 %v309
    %525 = vmatprep.subr.bf16.mxu0 0
    %526 = vmatpush1.bf16.msra.mxu0 %v310
    %527 = vmatprep.subr.bf16.mxu0 0
    %528 = vmatpush1.bf16.msra.mxu0 %v311
    %529 = vmatprep.subr.bf16.mxu0 0
    %530 = vmatpush1.bf16.msra.mxu0 %v312
    %531 = vmatprep.subr.bf16.mxu0 0
    %532 = vmatpush1.bf16.msra.mxu0 %v313
    %533 = vmatprep.subr.bf16.mxu0 0
    %534 = vmatpush1.bf16.msra.mxu0 %v314
    %535 = vmatprep.subr.bf16.mxu0 0
    %536 = vmatpush1.bf16.msra.mxu0 0
    %537 = vmatprep.subr.bf16.mxu0 0
    %538 = vmatpush1.bf16.msra.mxu0 0
    %539 = vmatprep.subr.bf16.mxu0 0
    %540 = vmatpush1.bf16.msra.mxu0 0
    %541 = vmatprep.subr.bf16.mxu0 0
    %542 = vmatpush1.bf16.msra.mxu0 0
    %543 = vmatprep.subr.bf16.mxu0 0
    %544 = vmatpush1.bf16.msra.mxu0 0
    %545 = vmatprep.subr.bf16.mxu0 0
    %546 = vmatpush1.bf16.msra.mxu0 0
    %547 = vmatprep.subr.bf16.mxu0 0
    %548 = vmatpush1.bf16.msra.mxu0 0
    %549 = vmatprep.subr.bf16.mxu0 0
    %550 = vmatpush1.bf16.msra.mxu0 0
    %551 = vmatprep.mubr.bf16.mxu0 0
    %552 = vmatmul.mubr.bf16.gmra.mrb[0].mxu0 %v518
    %v553 = vpop.f32.mrb[0].mxu0
    %v554 = vadd.f32 0.0, %v553
    %v555 = vpop.f32.mrb[0].mxu0
    %v556 = vpop.f32.mrb[0].mxu0
    %v557 = vadd.f32 0.0, %v556
    %v558 = vpop.f32.mrb[0].mxu0
    %559 = vdwg.mxu0
    %v560 = vadd.f32 %v516, %v554
    %v561 = vadd.f32 %v517, %v557
    %v562 = vtanh.pop %v560
    %v563 = vtanh.pop %v561
    %s564 = scalar_lea.vmem [#allocation3], 80
    %v565 = vld [vmem:[%s564] sm:$0xff]
    %v566 = vld [vmem:[%s564 + $0x8] sm:$0xff]
    %v567 = vpack.c.bf16 %v563, %v562
    %568 = vmatprep.subr.bf16.mxu0 0
    %569 = vmatpush1.bf16.msra.mxu0 %v307
    %570 = vmatprep.subr.bf16.mxu0 0
    %571 = vmatpush1.bf16.msra.mxu0 %v308
    %572 = vmatprep.subr.bf16.mxu0 0
    %573 = vmatpush1.bf16.msra.mxu0 %v309
    %574 = vmatprep.subr.bf16.mxu0 0
    %575 = vmatpush1.bf16.msra.mxu0 %v310
    %576 = vmatprep.subr.bf16.mxu0 0
    %577 = vmatpush1.bf16.msra.mxu0 %v311
    %578 = vmatprep.subr.bf16.mxu0 0
    %579 = vmatpush1.bf16.msra.mxu0 %v312
    %580 = vmatprep.subr.bf16.mxu0 0
    %581 = vmatpush1.bf16.msra.mxu0 %v313
    %582 = vmatprep.subr.bf16.mxu0 0
    %583 = vmatpush1.bf16.msra.mxu0 %v314
    %584 = vmatprep.subr.bf16.mxu0 0
    %585 = vmatpush1.bf16.msra.mxu0 0
    %586 = vmatprep.subr.bf16.mxu0 0
    %587 = vmatpush1.bf16.msra.mxu0 0
    %588 = vmatprep.subr.bf16.mxu0 0
    %589 = vmatpush1.bf16.msra.mxu0 0
    %590 = vmatprep.subr.bf16.mxu0 0
    %591 = vmatpush1.bf16.msra.mxu0 0
    %592 = vmatprep.subr.bf16.mxu0 0
    %593 = vmatpush1.bf16.msra.mxu0 0
    %594 = vmatprep.subr.bf16.mxu0 0
    %595 = vmatpush1.bf16.msra.mxu0 0
    %596 = vmatprep.subr.bf16.mxu0 0
    %597 = vmatpush1.bf16.msra.mxu0 0
    %598 = vmatprep.subr.bf16.mxu0 0
    %599 = vmatpush1.bf16.msra.mxu0 0
    %600 = vmatprep.mubr.bf16.mxu0 0
    %601 = vmatmul.mubr.bf16.gmra.mrb[0].mxu0 %v567
    %v602 = vpop.f32.mrb[0].mxu0
    %v603 = vadd.f32 0.0, %v602
    %v604 = vpop.f32.mrb[0].mxu0
    %v605 = vpop.f32.mrb[0].mxu0
    %v606 = vadd.f32 0.0, %v605
    %v607 = vpop.f32.mrb[0].mxu0
    %608 = vdwg.mxu0
    %v609 = vadd.f32 %v565, %v603
    %v610 = vadd.f32 %v566, %v606
    %v611 = vtanh.pop %v609
    %v612 = vtanh.pop %v610
    %s613 = scalar_lea.vmem [#allocation3], 96
    %v614 = vld [vmem:[%s613] sm:$0xff]
    %v615 = vld [vmem:[%s613 + $0x8] sm:$0xff]
    %v616 = vpack.c.bf16 %v612, %v611
    %617 = vmatprep.subr.bf16.mxu0 0
    %618 = vmatpush1.bf16.msra.mxu0 %v307
    %619 = vmatprep.subr.bf16.mxu0 0
    %620 = vmatpush1.bf16.msra.mxu0 %v308
    %621 = vmatprep.subr.bf16.mxu0 0
    %622 = vmatpush1.bf16.msra.mxu0 %v309
    %623 = vmatprep.subr.bf16.mxu0 0
    %624 = vmatpush1.bf16.msra.mxu0 %v310
    %625 = vmatprep.subr.bf16.mxu0 0
    %626 = vmatpush1.bf16.msra.mxu0 %v311
    %627 = vmatprep.subr.bf16.mxu0 0
    %628 = vmatpush1.bf16.msra.mxu0 %v312
    %629 = vmatprep.subr.bf16.mxu0 0
    %630 = vmatpush1.bf16.msra.mxu0 %v313
    %631 = vmatprep.subr.bf16.mxu0 0
    %632 = vmatpush1.bf16.msra.mxu0 %v314
    %633 = vmatprep.subr.bf16.mxu0 0
    %634 = vmatpush1.bf16.msra.mxu0 0
    %635 = vmatprep.subr.bf16.mxu0 0
    %636 = vmatpush1.bf16.msra.mxu0 0
    %637 = vmatprep.subr.bf16.mxu0 0
    %638 = vmatpush1.bf16.msra.mxu0 0
    %639 = vmatprep.subr.bf16.mxu0 0
    %640 = vmatpush1.bf16.msra.mxu0 0
    %641 = vmatprep.subr.bf16.mxu0 0
    %642 = vmatpush1.bf16.msra.mxu0 0
    %643 = vmatprep.subr.bf16.mxu0 0
    %644 = vmatpush1.bf16.msra.mxu0 0
    %645 = vmatprep.subr.bf16.mxu0 0
    %646 = vmatpush1.bf16.msra.mxu0 0
    %647 = vmatprep.subr.bf16.mxu0 0
    %648 = vmatpush1.bf16.msra.mxu0 0
    %649 = vmatprep.mubr.bf16.mxu0 0
    %650 = vmatmul.mubr.bf16.gmra.mrb[0].mxu0 %v616
    %v651 = vpop.f32.mrb[0].mxu0
    %v652 = vadd.f32 0.0, %v651
    %v653 = vpop.f32.mrb[0].mxu0
    %v654 = vpop.f32.mrb[0].mxu0
    %v655 = vadd.f32 0.0, %v654
    %v656 = vpop.f32.mrb[0].mxu0
    %657 = vdwg.mxu0
    %v658 = vadd.f32 %v614, %v652
    %v659 = vadd.f32 %v615, %v655
    %v660 = vtanh.pop %v658
    %v661 = vtanh.pop %v659
    %s662 = scalar_lea.vmem [#allocation3], 112
    %v663 = vld [vmem:[%s662] sm:$0xff]
    %v664 = vld [vmem:[%s662 + $0x8] sm:$0xff]
    %v665 = vpack.c.bf16 %v661, %v660
    %666 = vmatprep.subr.bf16.mxu0 0
    %667 = vmatpush1.bf16.msra.mxu0 %v307
    %668 = vmatprep.subr.bf16.mxu0 0
    %669 = vmatpush1.bf16.msra.mxu0 %v308
    %670 = vmatprep.subr.bf16.mxu0 0
    %671 = vmatpush1.bf16.msra.mxu0 %v309
    %672 = vmatprep.subr.bf16.mxu0 0
    %673 = vmatpush1.bf16.msra.mxu0 %v310
    %674 = vmatprep.subr.bf16.mxu0 0
    %675 = vmatpush1.bf16.msra.mxu0 %v311
    %676 = vmatprep.subr.bf16.mxu0 0
    %677 = vmatpush1.bf16.msra.mxu0 %v312
    %678 = vmatprep.subr.bf16.mxu0 0
    %679 = vmatpush1.bf16.msra.mxu0 %v313
    %680 = vmatprep.subr.bf16.mxu0 0
    %681 = vmatpush1.bf16.msra.mxu0 %v314
    %682 = vmatprep.subr.bf16.mxu0 0
    %683 = vmatpush1.bf16.msra.mxu0 0
    %684 = vmatprep.subr.bf16.mxu0 0
    %685 = vmatpush1.bf16.msra.mxu0 0
    %686 = vmatprep.subr.bf16.mxu0 0
    %687 = vmatpush1.bf16.msra.mxu0 0
    %688 = vmatprep.subr.bf16.mxu0 0
    %689 = vmatpush1.bf16.msra.mxu0 0
    %690 = vmatprep.subr.bf16.mxu0 0
    %691 = vmatpush1.bf16.msra.mxu0 0
    %692 = vmatprep.subr.bf16.mxu0 0
    %693 = vmatpush1.bf16.msra.mxu0 0
    %694 = vmatprep.subr.bf16.mxu0 0
    %695 = vmatpush1.bf16.msra.mxu0 0
    %696 = vmatprep.subr.bf16.mxu0 0
    %697 = vmatpush1.bf16.msra.mxu0 0
    %698 = vmatprep.mubr.bf16.mxu0 0
    %699 = vmatmul.mubr.bf16.gmra.mrb[0].mxu0 %v665
    %v700 = vpop.f32.mrb[0].mxu0
    %v701 = vadd.f32 0.0, %v700
    %v702 = vpop.f32.mrb[0].mxu0
    %v703 = vpop.f32.mrb[0].mxu0
    %v704 = vadd.f32 0.0, %v703
    %v705 = vpop.f32.mrb[0].mxu0
    %706 = vdwg.mxu0
    %v707 = vadd.f32 %v663, %v701
    %v708 = vadd.f32 %v664, %v704
    %v709 = vtanh.pop %v707
    %v710 = vtanh.pop %v708
    %711 = vst [vmem:[#allocation2] sm:$0xff] %v709
    %712 = vst [vmem:[#allocation2 + $0x8] sm:$0xff] %v710
    // Predicated region
    $region34: #{tpu_custom_call.1} parent=1 // pred_check
      %p713 = pneg %p39
    $region35: #{tpu_custom_call.1} parent=1 // pred_check_branch
      %715 = sbr.rel (%p713) target = $region37
    $region36: #{tpu_custom_call.1} parent=1 // pred_region
      %v716 = vld [vmem:[#allocation2] sm:$0xff]
      %v717 = vld [vmem:[#allocation2 + $0x8] sm:$0xff]
      %v718 = vpack.c.bf16 %v717, %v716
      %v719 = vld [vmem:[#allocation4] sm:$0xf]
      %v720 = vld [vmem:[#allocation4 + $0x4] sm:$0xf]
      %v721 = vld [vmem:[#allocation4 + $0x8] sm:$0xf]
      %v722 = vld [vmem:[#allocation4 + $0xc] sm:$0xf]
      %v723 = vld [vmem:[#allocation4 + $0x10] sm:$0xf]
      %v724 = vld [vmem:[#allocation4 + $0x14] sm:$0xf]
      %v725 = vld [vmem:[#allocation4 + $0x18] sm:$0xf]
      %v726 = vld [vmem:[#allocation4 + $0x1c] sm:$0xf]
      %v727 = vld [vmem:[#allocation4 + $0x20] sm:$0xf]
      %v728 = vld [vmem:[#allocation4 + $0x24] sm:$0xf]
      %v729 = vld [vmem:[#allocation4 + $0x28] sm:$0xf]
      %v730 = vld [vmem:[#allocation4 + $0x2c] sm:$0xf]
      %v731 = vld [vmem:[#allocation4 + $0x30] sm:$0xf]
      %v732 = vld [vmem:[#allocation4 + $0x34] sm:$0xf]
      %v733 = vld [vmem:[#allocation4 + $0x38] sm:$0xf]
      %v734 = vld [vmem:[#allocation4 + $0x3c] sm:$0xf]
      %v735 = vld [vmem:[%s5] sm:$0x1]
      %v737 = vlaneseq
      %v738 = vshrl.u32 %v737, 7
      %v739 = vsub.s32 0, %v738
      %v740 = vrot.slane %v735, %v739
      %v758 = vunpack.c.l.b16 %v719
      %v759 = vunpack.c.l.b16 %v720
      %v760 = vunpack.c.l.b16 %v721
      %v761 = vunpack.c.l.b16 %v722
      %v762 = vunpack.c.l.b16 %v723
      %v763 = vunpack.c.l.b16 %v724
      %v764 = vunpack.c.l.b16 %v725
      %v765 = vunpack.c.l.b16 %v726
      %v766 = vunpack.c.l.b16 %v727
      %v767 = vunpack.c.l.b16 %v728
      %v768 = vunpack.c.l.b16 %v729
      %v769 = vunpack.c.l.b16 %v730
      %v770 = vunpack.c.l.b16 %v731
      %v771 = vunpack.c.l.b16 %v732
      %v772 = vunpack.c.l.b16 %v733
      %v773 = vunpack.c.l.b16 %v734
      %v774 = vpack.c.b16 %v759, %v758
      %v775 = vpack.c.b16 %v761, %v760
      %v776 = vpack.c.b16 %v763, %v762
      %v777 = vpack.c.b16 %v765, %v764
      %v778 = vpack.c.b16 %v767, %v766
      %v779 = vpack.c.b16 %v769, %v768
      %v780 = vpack.c.b16 %v771, %v770
      %v781 = vpack.c.b16 %v773, %v772
      %790 = vmatprep.subr.bf16.mxu0 0
      %791 = vmatpush1.bf16.msra.mxu0 %v774
      %792 = vmatprep.subr.bf16.mxu0 0
      %793 = vmatpush1.bf16.msra.mxu0 %v775
      %794 = vmatprep.subr.bf16.mxu0 0
      %795 = vmatpush1.bf16.msra.mxu0 %v776
      %796 = vmatprep.subr.bf16.mxu0 0
      %797 = vmatpush1.bf16.msra.mxu0 %v777
      %798 = vmatprep.subr.bf16.mxu0 0
      %799 = vmatpush1.bf16.msra.mxu0 %v778
      %800 = vmatprep.subr.bf16.mxu0 0
      %801 = vmatpush1.bf16.msra.mxu0 %v779
      %802 = vmatprep.subr.bf16.mxu0 0
      %803 = vmatpush1.bf16.msra.mxu0 %v780
      %804 = vmatprep.subr.bf16.mxu0 0
      %805 = vmatpush1.bf16.msra.mxu0 %v781
      %806 = vmatprep.subr.bf16.mxu0 0
      %807 = vmatpush1.bf16.msra.mxu0 0
      %808 = vmatprep.subr.bf16.mxu0 0
      %809 = vmatpush1.bf16.msra.mxu0 0
      %810 = vmatprep.subr.bf16.mxu0 0
      %811 = vmatpush1.bf16.msra.mxu0 0
      %812 = vmatprep.subr.bf16.mxu0 0
      %813 = vmatpush1.bf16.msra.mxu0 0
      %814 = vmatprep.subr.bf16.mxu0 0
      %815 = vmatpush1.bf16.msra.mxu0 0
      %816 = vmatprep.subr.bf16.mxu0 0
      %817 = vmatpush1.bf16.msra.mxu0 0
      %818 = vmatprep.subr.bf16.mxu0 0
      %819 = vmatpush1.bf16.msra.mxu0 0
      %820 = vmatprep.subr.bf16.mxu0 0
      %821 = vmatpush1.bf16.msra.mxu0 0
      %822 = vmatprep.mubr.bf16.mxu0 0
      %823 = vmatmul.mubr.bf16.gmra.mrb[0].mxu0 %v718
      %v824 = vpop.f32.mrb[0].mxu0
      %v825 = vadd.f32 %v740, %v824
      %v826 = vpop.f32.mrb[0].mxu0
      %v827 = vpop.f32.mrb[0].mxu0
      %v828 = vadd.f32 %v740, %v827
      %v829 = vpop.f32.mrb[0].mxu0
      %830 = vdwg.mxu0
      %831 = vst [vmem:[#allocation7] sm:$0xff] %v825
      %832 = vst [vmem:[#allocation7 + $0x8] sm:$0xff] %v828
    $region37: #{tpu_custom_call.1} parent=1 // pred_fallthru
      _
    // Predicated region
    $region38: #{tpu_custom_call.1} parent=1 // pred_check
      _
    $region39: #{tpu_custom_call.1} parent=1 // pred_check_branch
      %834 = sbr.rel (0) target = $region41
    $region40: #{tpu_custom_call.1} parent=1 // pred_region
      %s836 = ssub.s32 256, 256
      %837 = vsyncadd [#allocation6], %s836
      %s838 = sshll.u32 [#allocation7], 4
      %s839 = int_to_ptr.vmem [resolvable:$true] %s838
      %844 = dma.vmem_to_hbm [thread:$0]  %s839, 256, %s6, [#allocation6], 128, 128, 8
    $region41: #{tpu_custom_call.1} parent=1 // pred_fallthru
      _
    // Predicated region
    $region42: #{tpu_custom_call.1} parent=1 // pred_check
      _
    $region43: #{tpu_custom_call.1} parent=1 // pred_check_branch
      %846 = sbr.rel (0) target = $region45
    $region44: #{tpu_custom_call.1} parent=1 // pred_region
      %847 = dma.done [#allocation6], 256
    $region45: #{tpu_custom_call.1} parent=1 // pred_fallthru
      _
    %848 = vsyncpa [#allocation5], 1
    %849 = vsyncpa [#allocation6], 1

// kernel: tpu_custom_call.1
$region0: #{tpu_custom_call.1}
  #allocation0 [shape = 'u32[]', space=smem, size = 0x4, offset = 0x4, fixed_abs, tag = 'smem constant byte address 0x4 - core index']
  #allocation1 [shape = 'u32[144,128]{1,0:T(1,128)}', space=vmem, size = 0x12000, scoped, tag = 'internal scratch']
  #allocation2 [shape = 'f32[16,128]{1,0:T(8,128)}', space=vmem, size = 0x2000, scoped, tag = 'scratch operand']
  #allocation3 [shape = 'f32[128,128]{1,0:T(8,128)}', space=vmem, size = 0x10000, scoped, tag = 'scratch operand']
  %s0 = inlined_call_operand.vmem [shape: bf16[128,16], index: 0, kind: input, shape index: {}]
  %s1 = inlined_call_operand.vmem [shape: bf16[16,128], index: 1, kind: input, shape index: {}]
  %s2 = inlined_call_operand.vmem [shape: bf16[128,128], index: 2, kind: input, shape index: {}]
  %s3 = inlined_call_operand.vmem [shape: f32[1,128], index: 3, kind: input, shape index: {}]
  %s4 = inlined_call_operand.hbm [shape: bf16[128,128], index: 4, kind: input, shape index: {}]
  %s5 = inlined_call_operand.vmem [shape: f32[1,128], index: 5, kind: input, shape index: {}]
  %s6 = inlined_call_operand.hbm [shape: f32[16,128], index: 6, kind: output, shape index: {}]
  %s7 = sld [smem:[#allocation0]]
  $region46: #{tpu_custom_call.1} parent=0
    _
  %s9 = ssub.s32 1, %s7
  %s10 = scalar_select 0, %s9, %s7
  $region1: #{tpu_custom_call.1} parent=0
    #allocation4 [shape = 'u8[32768]{0}', space=vmem, size = 0x8000, scoped, tag = 'input window, operand 4, single buffered']
    #allocation5 [shape = 's32[1]{0}', space=sflag, size = 0x4, scoped, tag = 'scoped memory for tpu_custom_call.1']
    #allocation6 [shape = 's32[1]{0}', space=sflag, size = 0x4, scoped, tag = 'scoped memory for tpu_custom_call.1']
    #allocation7 [shape = 'u8[8192]{0}', space=vmem, size = 0x2000, scoped, tag = 'output window, operand 0, single buffered']
    %11 = vsyncpa [#allocation5], 0
    %12 = vsyncpa [#allocation6], 0
    // Predicated region
    $region2: #{tpu_custom_call.1} parent=1 // pred_check
      _
    $region3: #{tpu_custom_call.1} parent=1 // pred_check_branch
      %14 = sbr.rel (0) target = $region5
    $region4: #{tpu_custom_call.1} parent=1 // pred_region
      _
    $region5: #{tpu_custom_call.1} parent=1 // pred_fallthru
      _
    // Predicated region
    $region6: #{tpu_custom_call.1} parent=1 // pred_check
      _
    $region7: #{tpu_custom_call.1} parent=1 // pred_check_branch
      %16 = sbr.rel (0) target = $region9
    $region8: #{tpu_custom_call.1} parent=1 // pred_region
      _
    $region9: #{tpu_custom_call.1} parent=1 // pred_fallthru
      _
    // Predicated region
    $region10: #{tpu_custom_call.1} parent=1 // pred_check
      _
    $region11: #{tpu_custom_call.1} parent=1 // pred_check_branch
      %18 = sbr.rel (0) target = $region13
    $region12: #{tpu_custom_call.1} parent=1 // pred_region
      _
    $region13: #{tpu_custom_call.1} parent=1 // pred_fallthru
      _
    // Predicated region
    $region14: #{tpu_custom_call.1} parent=1 // pred_check
      _
    $region15: #{tpu_custom_call.1} parent=1 // pred_check_branch
      %20 = sbr.rel (0) target = $region17
    $region16: #{tpu_custom_call.1} parent=1 // pred_region
      _
    $region17: #{tpu_custom_call.1} parent=1 // pred_fallthru
      _
    // Predicated region
    $region18: #{tpu_custom_call.1} parent=1 // pred_check
      _
    $region19: #{tpu_custom_call.1} parent=1 // pred_check_branch
      %22 = sbr.rel (0) target = $region21
    $region20: #{tpu_custom_call.1} parent=1 // pred_region
      %s24 = ssub.s32 1024, 1024
      %25 = vsyncadd [#allocation5], %s24
      %s26 = sshll.u32 [#allocation4], 4
      %s27 = int_to_ptr.vmem [resolvable:$true] %s26
      %32 = dma.hbm_to_vmem [thread:$0]  %s4, 1024, %s27, [#allocation5], 64, 64, 4
    $region21: #{tpu_custom_call.1} parent=1 // pred_fallthru
      _
    // Predicated region
    $region22: #{tpu_custom_call.1} parent=1 // pred_check
      _
    $region23: #{tpu_custom_call.1} parent=1 // pred_check_branch
      %34 = sbr.rel (0) target = $region25
    $region24: #{tpu_custom_call.1} parent=1 // pred_region
      _
    $region25: #{tpu_custom_call.1} parent=1 // pred_fallthru
      _
    // Predicated region
    $region26: #{tpu_custom_call.1} parent=1 // pred_check
      _
    $region27: #{tpu_custom_call.1} parent=1 // pred_check_branch
      %36 = sbr.rel (0) target = $region29
    $region28: #{tpu_custom_call.1} parent=1 // pred_region
      %37 = dma.done [#allocation5], 1024
    $region29: #{tpu_custom_call.1} parent=1 // pred_fallthru
      _
    %p39 = scmp.eq.s32.totalorder 0, 0
    // Predicated region
    $region30: #{tpu_custom_call.1} parent=1 // pred_check
      %p40 = pneg %p39
    $region31: #{tpu_custom_call.1} parent=1 // pred_check_branch
      %42 = sbr.rel (%p40) target = $region33
    $region32: #{tpu_custom_call.1} parent=1 // pred_region
      %43 = vst [vmem:[#allocation2] sm:$0xff] 0.0
      %44 = vst [vmem:[#allocation2 + $0x8] sm:$0xff] 0.0
    $region33: #{tpu_custom_call.1} parent=1 // pred_fallthru
      _
    %v45 = vld [vmem:[%s0] sm:$0xf]
    %v46 = vld [vmem:[%s0 + $0x4] sm:$0xf]
    %v47 = vld [vmem:[%s0 + $0x8] sm:$0xf]
    %v48 = vld [vmem:[%s0 + $0xc] sm:$0xf]
    %v49 = vld [vmem:[%s0 + $0x10] sm:$0xf]
    %v50 = vld [vmem:[%s0 + $0x14] sm:$0xf]
    %v51 = vld [vmem:[%s0 + $0x18] sm:$0xf]
    %v52 = vld [vmem:[%s0 + $0x1c] sm:$0xf]
    %v53 = vld [vmem:[%s0 + $0x20] sm:$0xf]
    %v54 = vld [vmem:[%s0 + $0x24] sm:$0xf]
    %v55 = vld [vmem:[%s0 + $0x28] sm:$0xf]
    %v56 = vld [vmem:[%s0 + $0x2c] sm:$0xf]
    %v57 = vld [vmem:[%s0 + $0x30] sm:$0xf]
    %v58 = vld [vmem:[%s0 + $0x34] sm:$0xf]
    %v59 = vld [vmem:[%s0 + $0x38] sm:$0xf]
    %v60 = vld [vmem:[%s0 + $0x3c] sm:$0xf]
    %v61 = vld [vmem:[%s1] sm:$0xf]
    %v62 = vld [vmem:[%s1 + $0x4] sm:$0xf]
    %v63 = vld [vmem:[%s3] sm:$0x1]
    %v65 = vlaneseq
    %v66 = vshrl.u32 %v65, 7
    %v67 = vsub.s32 0, %v66
    %v68 = vrot.slane %v63, %v67
    %v86 = vunpack.c.l.b16 %v45
    %v87 = vunpack.c.l.b16 %v46
    %v88 = vunpack.c.l.b16 %v47
    %v89 = vunpack.c.l.b16 %v48
    %v90 = vunpack.c.l.b16 %v49
    %v91 = vunpack.c.l.b16 %v50
    %v92 = vunpack.c.l.b16 %v51
    %v93 = vunpack.c.l.b16 %v52
    %v94 = vunpack.c.l.b16 %v53
    %v95 = vunpack.c.l.b16 %v54
    %v96 = vunpack.c.l.b16 %v55
    %v97 = vunpack.c.l.b16 %v56
    %v98 = vunpack.c.l.b16 %v57
    %v99 = vunpack.c.l.b16 %v58
    %v100 = vunpack.c.l.b16 %v59
    %v101 = vunpack.c.l.b16 %v60
    %v102 = vpack.c.b16 %v87, %v86
    %v103 = vpack.c.b16 %v89, %v88
    %v104 = vpack.c.b16 %v91, %v90
    %v105 = vpack.c.b16 %v93, %v92
    %v106 = vpack.c.b16 %v95, %v94
    %v107 = vpack.c.b16 %v97, %v96
    %v108 = vpack.c.b16 %v99, %v98
    %v109 = vpack.c.b16 %v101, %v100
    %v112 = vunpack.c.l.b16 %v61
    %v113 = vunpack.c.l.b16 %v62
    %v114 = vpack.c.b16 %v113, %v112
    %vm116 = vcmask 130048
    %v118 = vsel %vm116, %v102, 0
    %v121 = vsel %vm116, %v103, 0
    %v124 = vsel %vm116, %v104, 0
    %v127 = vsel %vm116, %v105, 0
    %v130 = vsel %vm116, %v106, 0
    %v133 = vsel %vm116, %v107, 0
    %v136 = vsel %vm116, %v108, 0
    %v139 = vsel %vm116, %v109, 0
    %141 = vmatprep.subr.bf16.mxu0 0
    %142 = vmatpush1.bf16.msra.mxu0 %v114
    %143 = vmatprep.subr.bf16.mxu0 0
    %144 = vmatpush1.bf16.msra.mxu0 0
    %145 = vmatprep.subr.bf16.mxu0 0
    %146 = vmatpush1.bf16.msra.mxu0 0
    %147 = vmatprep.subr.bf16.mxu0 0
    %148 = vmatpush1.bf16.msra.mxu0 0
    %149 = vmatprep.subr.bf16.mxu0 0
    %150 = vmatpush1.bf16.msra.mxu0 0
    %151 = vmatprep.subr.bf16.mxu0 0
    %152 = vmatpush1.bf16.msra.mxu0 0
    %153 = vmatprep.subr.bf16.mxu0 0
    %154 = vmatpush1.bf16.msra.mxu0 0
    %155 = vmatprep.subr.bf16.mxu0 0
    %156 = vmatpush1.bf16.msra.mxu0 0
    %157 = vmatprep.subr.bf16.mxu0 0
    %158 = vmatpush1.bf16.msra.mxu0 0
    %159 = vmatprep.subr.bf16.mxu0 0
    %160 = vmatpush1.bf16.msra.mxu0 0
    %161 = vmatprep.subr.bf16.mxu0 0
    %162 = vmatpush1.bf16.msra.mxu0 0
    %163 = vmatprep.subr.bf16.mxu0 0
    %164 = vmatpush1.bf16.msra.mxu0 0
    %165 = vmatprep.subr.bf16.mxu0 0
    %166 = vmatpush1.bf16.msra.mxu0 0
    %167 = vmatprep.subr.bf16.mxu0 0
    %168 = vmatpush1.bf16.msra.mxu0 0
    %169 = vmatprep.subr.bf16.mxu0 0
    %170 = vmatpush1.bf16.msra.mxu0 0
    %171 = vmatprep.subr.bf16.mxu0 0
    %172 = vmatpush1.bf16.msra.mxu0 0
    %173 = vmatprep.mubr.bf16.mxu0 0
    %174 = vmatmul.mubr.bf16.gmra.mrb[0].mxu0 %v118
    %v175 = vpop.f32.mrb[0].mxu0
    %v176 = vadd.f32 %v68, %v175
    %v177 = vpop.f32.mrb[0].mxu0
    %v178 = vpop.f32.mrb[0].mxu0
    %v179 = vadd.f32 %v68, %v178
    %v180 = vpop.f32.mrb[0].mxu0
    %181 = vmatprep.mubr.bf16.mxu0 0
    %182 = vmatmul.mubr.bf16.gmra.mrb[0].mxu0 %v121
    %v183 = vpop.f32.mrb[0].mxu0
    %v184 = vadd.f32 %v68, %v183
    %v185 = vpop.f32.mrb[0].mxu0
    %v186 = vpop.f32.mrb[0].mxu0
    %v187 = vadd.f32 %v68, %v186
    %v188 = vpop.f32.mrb[0].mxu0
    %189 = vmatprep.mubr.bf16.mxu0 0
    %190 = vmatmul.mubr.bf16.gmra.mrb[0].mxu0 %v124
    %v191 = vpop.f32.mrb[0].mxu0
    %v192 = vadd.f32 %v68, %v191
    %v193 = vpop.f32.mrb[0].mxu0
    %v194 = vpop.f32.mrb[0].mxu0
    %v195 = vadd.f32 %v68, %v194
    %v196 = vpop.f32.mrb[0].mxu0
    %197 = vmatprep.mubr.bf16.mxu0 0
    %198 = vmatmul.mubr.bf16.gmra.mrb[0].mxu0 %v127
    %v199 = vpop.f32.mrb[0].mxu0
    %v200 = vadd.f32 %v68, %v199
    %v201 = vpop.f32.mrb[0].mxu0
    %v202 = vpop.f32.mrb[0].mxu0
    %v203 = vadd.f32 %v68, %v202
    %v204 = vpop.f32.mrb[0].mxu0
    %205 = vmatprep.mubr.bf16.mxu0 0
    %206 = vmatmul.mubr.bf16.gmra.mrb[0].mxu0 %v130
    %v207 = vpop.f32.mrb[0].mxu0
    %v208 = vadd.f32 %v68, %v207
    %v209 = vpop.f32.mrb[0].mxu0
    %v210 = vpop.f32.mrb[0].mxu0
    %v211 = vadd.f32 %v68, %v210
    %v212 = vpop.f32.mrb[0].mxu0
    %213 = vmatprep.mubr.bf16.mxu0 0
    %214 = vmatmul.mubr.bf16.gmra.mrb[0].mxu0 %v133
    %v215 = vpop.f32.mrb[0].mxu0
    %v216 = vadd.f32 %v68, %v215
    %v217 = vpop.f32.mrb[0].mxu0
    %v218 = vpop.f32.mrb[0].mxu0
    %v219 = vadd.f32 %v68, %v218
    %v220 = vpop.f32.mrb[0].mxu0
    %221 = vmatprep.mubr.bf16.mxu0 0
    %222 = vmatmul.mubr.bf16.gmra.mrb[0].mxu0 %v136
    %v223 = vpop.f32.mrb[0].mxu0
    %v224 = vadd.f32 %v68, %v223
    %v225 = vpop.f32.mrb[0].mxu0
    %v226 = vpop.f32.mrb[0].mxu0
    %v227 = vadd.f32 %v68, %v226
    %v228 = vpop.f32.mrb[0].mxu0
    %229 = vmatprep.mubr.bf16.mxu0 0
    %230 = vmatmul.mubr.bf16.gmra.mrb[0].mxu0 %v139
    %v231 = vpop.f32.mrb[0].mxu0
    %v232 = vadd.f32 %v68, %v231
    %v233 = vpop.f32.mrb[0].mxu0
    %v234 = vpop.f32.mrb[0].mxu0
    %v235 = vadd.f32 %v68, %v234
    %v236 = vpop.f32.mrb[0].mxu0
    %237 = vdwg.mxu0
    %238 = vst [vmem:[#allocation3] sm:$0xff] %v176
    %239 = vst [vmem:[#allocation3 + $0x8] sm:$0xff] %v179
    %240 = vst [vmem:[#allocation3 + $0x10] sm:$0xff] %v184
    %241 = vst [vmem:[#allocation3 + $0x18] sm:$0xff] %v187
    %242 = vst [vmem:[#allocation3 + $0x20] sm:$0xff] %v192
    %243 = vst [vmem:[#allocation3 + $0x28] sm:$0xff] %v195
    %244 = vst [vmem:[#allocation3 + $0x30] sm:$0xff] %v200
    %245 = vst [vmem:[#allocation3 + $0x38] sm:$0xff] %v203
    %246 = vst [vmem:[#allocation3 + $0x40] sm:$0xff] %v208
    %247 = vst [vmem:[#allocation3 + $0x48] sm:$0xff] %v211
    %248 = vst [vmem:[#allocation3 + $0x50] sm:$0xff] %v216
    %249 = vst [vmem:[#allocation3 + $0x58] sm:$0xff] %v219
    %250 = vst [vmem:[#allocation3 + $0x60] sm:$0xff] %v224
    %251 = vst [vmem:[#allocation3 + $0x68] sm:$0xff] %v227
    %252 = vst [vmem:[#allocation3 + $0x70] sm:$0xff] %v232
    %253 = vst [vmem:[#allocation3 + $0x78] sm:$0xff] %v235
    %v254 = vld [vmem:[%s2] sm:$0xf]
    %v255 = vld [vmem:[%s2 + $0x4] sm:$0xf]
    %v256 = vld [vmem:[%s2 + $0x8] sm:$0xf]
    %v257 = vld [vmem:[%s2 + $0xc] sm:$0xf]
    %v258 = vld [vmem:[%s2 + $0x10] sm:$0xf]
    %v259 = vld [vmem:[%s2 + $0x14] sm:$0xf]
    %v260 = vld [vmem:[%s2 + $0x18] sm:$0xf]
    %v261 = vld [vmem:[%s2 + $0x1c] sm:$0xf]
    %v262 = vld [vmem:[%s2 + $0x20] sm:$0xf]
    %v263 = vld [vmem:[%s2 + $0x24] sm:$0xf]
    %v264 = vld [vmem:[%s2 + $0x28] sm:$0xf]
    %v265 = vld [vmem:[%s2 + $0x2c] sm:$0xf]
    %v266 = vld [vmem:[%s2 + $0x30] sm:$0xf]
    %v267 = vld [vmem:[%s2 + $0x34] sm:$0xf]
    %v268 = vld [vmem:[%s2 + $0x38] sm:$0xf]
    %v269 = vld [vmem:[%s2 + $0x3c] sm:$0xf]
    %v270 = vld [vmem:[#allocation2] sm:$0xff]
    %v271 = vld [vmem:[#allocation2 + $0x8] sm:$0xff]
    %v272 = vld [vmem:[#allocation3] sm:$0xff]
    %v273 = vld [vmem:[#allocation3 + $0x8] sm:$0xff]
    %v274 = vpack.c.bf16 %v271, %v270
    %v291 = vunpack.c.l.b16 %v254
    %v292 = vunpack.c.l.b16 %v255
    %v293 = vunpack.c.l.b16 %v256
    %v294 = vunpack.c.l.b16 %v257
    %v295 = vunpack.c.l.b16 %v258
    %v296 = vunpack.c.l.b16 %v259
    %v297 = vunpack.c.l.b16 %v260
    %v298 = vunpack.c.l.b16 %v261
    %v299 = vunpack.c.l.b16 %v262
    %v300 = vunpack.c.l.b16 %v263
    %v301 = vunpack.c.l.b16 %v264
    %v302 = vunpack.c.l.b16 %v265
    %v303 = vunpack.c.l.b16 %v266
    %v304 = vunpack.c.l.b16 %v267
    %v305 = vunpack.c.l.b16 %v268
    %v306 = vunpack.c.l.b16 %v269
    %v307 = vpack.c.b16 %v292, %v291
    %v308 = vpack.c.b16 %v294, %v293
    %v309 = vpack.c.b16 %v296, %v295
    %v310 = vpack.c.b16 %v298, %v297
    %v311 = vpack.c.b16 %v300, %v299
    %v312 = vpack.c.b16 %v302, %v301
    %v313 = vpack.c.b16 %v304, %v303
    %v314 = vpack.c.b16 %v306, %v305
    %323 = vmatprep.subr.bf16.mxu0 0
    %324 = vmatpush1.bf16.msra.mxu0 %v307
    %325 = vmatprep.subr.bf16.mxu0 0
    %326 = vmatpush1.bf16.msra.mxu0 %v308
    %327 = vmatprep.subr.bf16.mxu0 0
    %328 = vmatpush1.bf16.msra.mxu0 %v309
    %329 = vmatprep.subr.bf16.mxu0 0
    %330 = vmatpush1.bf16.msra.mxu0 %v310
    %331 = vmatprep.subr.bf16.mxu0 0
    %332 = vmatpush1.bf16.msra.mxu0 %v311
    %333 = vmatprep.subr.bf16.mxu0 0
    %334 = vmatpush1.bf16.msra.mxu0 %v312
    %335 = vmatprep.subr.bf16.mxu0 0
    %336 = vmatpush1.bf16.msra.mxu0 %v313
    %337 = vmatprep.subr.bf16.mxu0 0
    %338 = vmatpush1.bf16.msra.mxu0 %v314
    %339 = vmatprep.subr.bf16.mxu0 0
    %340 = vmatpush1.bf16.msra.mxu0 0
    %341 = vmatprep.subr.bf16.mxu0 0
    %342 = vmatpush1.bf16.msra.mxu0 0
    %343 = vmatprep.subr.bf16.mxu0 0
    %344 = vmatpush1.bf16.msra.mxu0 0
    %345 = vmatprep.subr.bf16.mxu0 0
    %346 = vmatpush1.bf16.msra.mxu0 0
    %347 = vmatprep.subr.bf16.mxu0 0
    %348 = vmatpush1.bf16.msra.mxu0 0
    %349 = vmatprep.subr.bf16.mxu0 0
    %350 = vmatpush1.bf16.msra.mxu0 0
    %351 = vmatprep.subr.bf16.mxu0 0
    %352 = vmatpush1.bf16.msra.mxu0 0
    %353 = vmatprep.subr.bf16.mxu0 0
    %354 = vmatpush1.bf16.msra.mxu0 0
    %355 = vmatprep.mubr.bf16.mxu0 0
    %356 = vmatmul.mubr.bf16.gmra.mrb[0].mxu0 %v274
    %v357 = vpop.f32.mrb[0].mxu0
    %v358 = vadd.f32 0.0, %v357
    %v359 = vpop.f32.mrb[0].mxu0
    %v360 = vpop.f32.mrb[0].mxu0
    %v361 = vadd.f32 0.0, %v360
    %v362 = vpop.f32.mrb[0].mxu0
    %363 = vdwg.mxu0
    %v364 = vadd.f32 %v272, %v358
    %v365 = vadd.f32 %v273, %v361
    %v366 = vtanh.pop %v364
    %v367 = vtanh.pop %v365
    %s368 = scalar_lea.vmem [#allocation3], 16
    %v369 = vld [vmem:[%s368] sm:$0xff]
    %v370 = vld [vmem:[%s368 + $0x8] sm:$0xff]
    %v371 = vpack.c.bf16 %v367, %v366
    %372 = vmatprep.subr.bf16.mxu0 0
    %373 = vmatpush1.bf16.msra.mxu0 %v307
    %374 = vmatprep.subr.bf16.mxu0 0
    %375 = vmatpush1.bf16.msra.mxu0 %v308
    %376 = vmatprep.subr.bf16.mxu0 0
    %377 = vmatpush1.bf16.msra.mxu0 %v309
    %378 = vmatprep.subr.bf16.mxu0 0
    %379 = vmatpush1.bf16.msra.mxu0 %v310
    %380 = vmatprep.subr.bf16.mxu0 0
    %381 = vmatpush1.bf16.msra.mxu0 %v311
    %382 = vmatprep.subr.bf16.mxu0 0
    %383 = vmatpush1.bf16.msra.mxu0 %v312
    %384 = vmatprep.subr.bf16.mxu0 0
    %385 = vmatpush1.bf16.msra.mxu0 %v313
    %386 = vmatprep.subr.bf16.mxu0 0
    %387 = vmatpush1.bf16.msra.mxu0 %v314
    %388 = vmatprep.subr.bf16.mxu0 0
    %389 = vmatpush1.bf16.msra.mxu0 0
    %390 = vmatprep.subr.bf16.mxu0 0
    %391 = vmatpush1.bf16.msra.mxu0 0
    %392 = vmatprep.subr.bf16.mxu0 0
    %393 = vmatpush1.bf16.msra.mxu0 0
    %394 = vmatprep.subr.bf16.mxu0 0
    %395 = vmatpush1.bf16.msra.mxu0 0
    %396 = vmatprep.subr.bf16.mxu0 0
    %397 = vmatpush1.bf16.msra.mxu0 0
    %398 = vmatprep.subr.bf16.mxu0 0
    %399 = vmatpush1.bf16.msra.mxu0 0
    %400 = vmatprep.subr.bf16.mxu0 0
    %401 = vmatpush1.bf16.msra.mxu0 0
    %402 = vmatprep.subr.bf16.mxu0 0
    %403 = vmatpush1.bf16.msra.mxu0 0
    %404 = vmatprep.mubr.bf16.mxu0 0
    %405 = vmatmul.mubr.bf16.gmra.mrb[0].mxu0 %v371
    %v406 = vpop.f32.mrb[0].mxu0
    %v407 = vadd.f32 0.0, %v406
    %v408 = vpop.f32.mrb[0].mxu0
    %v409 = vpop.f32.mrb[0].mxu0
    %v410 = vadd.f32 0.0, %v409
    %v411 = vpop.f32.mrb[0].mxu0
    %412 = vdwg.mxu0
    %v413 = vadd.f32 %v369, %v407
    %v414 = vadd.f32 %v370, %v410
    %v415 = vtanh.pop %v413
    %v416 = vtanh.pop %v414
    %s417 = scalar_lea.vmem [#allocation3], 32
    %v418 = vld [vmem:[%s417] sm:$0xff]
    %v419 = vld [vmem:[%s417 + $0x8] sm:$0xff]
    %v420 = vpack.c.bf16 %v416, %v415
    %421 = vmatprep.subr.bf16.mxu0 0
    %422 = vmatpush1.bf16.msra.mxu0 %v307
    %423 = vmatprep.subr.bf16.mxu0 0
    %424 = vmatpush1.bf16.msra.mxu0 %v308
    %425 = vmatprep.subr.bf16.mxu0 0
    %426 = vmatpush1.bf16.msra.mxu0 %v309
    %427 = vmatprep.subr.bf16.mxu0 0
    %428 = vmatpush1.bf16.msra.mxu0 %v310
    %429 = vmatprep.subr.bf16.mxu0 0
    %430 = vmatpush1.bf16.msra.mxu0 %v311
    %431 = vmatprep.subr.bf16.mxu0 0
    %432 = vmatpush1.bf16.msra.mxu0 %v312
    %433 = vmatprep.subr.bf16.mxu0 0
    %434 = vmatpush1.bf16.msra.mxu0 %v313
    %435 = vmatprep.subr.bf16.mxu0 0
    %436 = vmatpush1.bf16.msra.mxu0 %v314
    %437 = vmatprep.subr.bf16.mxu0 0
    %438 = vmatpush1.bf16.msra.mxu0 0
    %439 = vmatprep.subr.bf16.mxu0 0
    %440 = vmatpush1.bf16.msra.mxu0 0
    %441 = vmatprep.subr.bf16.mxu0 0
    %442 = vmatpush1.bf16.msra.mxu0 0
    %443 = vmatprep.subr.bf16.mxu0 0
    %444 = vmatpush1.bf16.msra.mxu0 0
    %445 = vmatprep.subr.bf16.mxu0 0
    %446 = vmatpush1.bf16.msra.mxu0 0
    %447 = vmatprep.subr.bf16.mxu0 0
    %448 = vmatpush1.bf16.msra.mxu0 0
    %449 = vmatprep.subr.bf16.mxu0 0
    %450 = vmatpush1.bf16.msra.mxu0 0
    %451 = vmatprep.subr.bf16.mxu0 0
    %452 = vmatpush1.bf16.msra.mxu0 0
    %453 = vmatprep.mubr.bf16.mxu0 0
    %454 = vmatmul.mubr.bf16.gmra.mrb[0].mxu0 %v420
    %v455 = vpop.f32.mrb[0].mxu0
    %v456 = vadd.f32 0.0, %v455
    %v457 = vpop.f32.mrb[0].mxu0
    %v458 = vpop.f32.mrb[0].mxu0
    %v459 = vadd.f32 0.0, %v458
    %v460 = vpop.f32.mrb[0].mxu0
    %461 = vdwg.mxu0
    %v462 = vadd.f32 %v418, %v456
    %v463 = vadd.f32 %v419, %v459
    %v464 = vtanh.pop %v462
    %v465 = vtanh.pop %v463
    %s466 = scalar_lea.vmem [#allocation3], 48
    %v467 = vld [vmem:[%s466] sm:$0xff]
    %v468 = vld [vmem:[%s466 + $0x8] sm:$0xff]
    %v469 = vpack.c.bf16 %v465, %v464
    %470 = vmatprep.subr.bf16.mxu0 0
    %471 = vmatpush1.bf16.msra.mxu0 %v307
    %472 = vmatprep.subr.bf16.mxu0 0
    %473 = vmatpush1.bf16.msra.mxu0 %v308
    %474 = vmatprep.subr.bf16.mxu0 0
    %475 = vmatpush1.bf16.msra.mxu0 %v309
    %476 = vmatprep.subr.bf16.mxu0 0
    %477 = vmatpush1.bf16.msra.mxu0 %v310
    %478 = vmatprep.subr.bf16.mxu0 0
    %479 = vmatpush1.bf16.msra.mxu0 %v311
    %480 = vmatprep.subr.bf16.mxu0 0
    %481 = vmatpush1.bf16.msra.mxu0 %v312
    %482 = vmatprep.subr.bf16.mxu0 0
    %483 = vmatpush1.bf16.msra.mxu0 %v313
    %484 = vmatprep.subr.bf16.mxu0 0
    %485 = vmatpush1.bf16.msra.mxu0 %v314
    %486 = vmatprep.subr.bf16.mxu0 0
    %487 = vmatpush1.bf16.msra.mxu0 0
    %488 = vmatprep.subr.bf16.mxu0 0
    %489 = vmatpush1.bf16.msra.mxu0 0
    %490 = vmatprep.subr.bf16.mxu0 0
    %491 = vmatpush1.bf16.msra.mxu0 0
    %492 = vmatprep.subr.bf16.mxu0 0
    %493 = vmatpush1.bf16.msra.mxu0 0
    %494 = vmatprep.subr.bf16.mxu0 0
    %495 = vmatpush1.bf16.msra.mxu0 0
    %496 = vmatprep.subr.bf16.mxu0 0
    %497 = vmatpush1.bf16.msra.mxu0 0
    %498 = vmatprep.subr.bf16.mxu0 0
    %499 = vmatpush1.bf16.msra.mxu0 0
    %500 = vmatprep.subr.bf16.mxu0 0
    %501 = vmatpush1.bf16.msra.mxu0 0
    %502 = vmatprep.mubr.bf16.mxu0 0
    %503 = vmatmul.mubr.bf16.gmra.mrb[0].mxu0 %v469
    %v504 = vpop.f32.mrb[0].mxu0
    %v505 = vadd.f32 0.0, %v504
    %v506 = vpop.f32.mrb[0].mxu0
    %v507 = vpop.f32.mrb[0].mxu0
    %v508 = vadd.f32 0.0, %v507
    %v509 = vpop.f32.mrb[0].mxu0
    %510 = vdwg.mxu0
    %v511 = vadd.f32 %v467, %v505
    %v512 = vadd.f32 %v468, %v508
    %v513 = vtanh.pop %v511
    %v514 = vtanh.pop %v512
    %s515 = scalar_lea.vmem [#allocation3], 64
    %v516 = vld [vmem:[%s515] sm:$0xff]
    %v517 = vld [vmem:[%s515 + $0x8] sm:$0xff]
    %v518 = vpack.c.bf16 %v514, %v513
    %519 = vmatprep.subr.bf16.mxu0 0
    %520 = vmatpush1.bf16.msra.mxu0 %v307
    %521 = vmatprep.subr.bf16.mxu0 0
    %522 = vmatpush1.bf16.msra.mxu0 %v308
    %523 = vmatprep.subr.bf16.mxu0 0
    %524 = vmatpush1.bf16.msra.mxu0 %v309
    %525 = vmatprep.subr.bf16.mxu0 0
    %526 = vmatpush1.bf16.msra.mxu0 %v310
    %527 = vmatprep.subr.bf16.mxu0 0
    %528 = vmatpush1.bf16.msra.mxu0 %v311
    %529 = vmatprep.subr.bf16.mxu0 0
    %530 = vmatpush1.bf16.msra.mxu0 %v312
    %531 = vmatprep.subr.bf16.mxu0 0
    %532 = vmatpush1.bf16.msra.mxu0 %v313
    %533 = vmatprep.subr.bf16.mxu0 0
    %534 = vmatpush1.bf16.msra.mxu0 %v314
    %535 = vmatprep.subr.bf16.mxu0 0
    %536 = vmatpush1.bf16.msra.mxu0 0
    %537 = vmatprep.subr.bf16.mxu0 0
    %538 = vmatpush1.bf16.msra.mxu0 0
    %539 = vmatprep.subr.bf16.mxu0 0
    %540 = vmatpush1.bf16.msra.mxu0 0
    %541 = vmatprep.subr.bf16.mxu0 0
    %542 = vmatpush1.bf16.msra.mxu0 0
    %543 = vmatprep.subr.bf16.mxu0 0
    %544 = vmatpush1.bf16.msra.mxu0 0
    %545 = vmatprep.subr.bf16.mxu0 0
    %546 = vmatpush1.bf16.msra.mxu0 0
    %547 = vmatprep.subr.bf16.mxu0 0
    %548 = vmatpush1.bf16.msra.mxu0 0
    %549 = vmatprep.subr.bf16.mxu0 0
    %550 = vmatpush1.bf16.msra.mxu0 0
    %551 = vmatprep.mubr.bf16.mxu0 0
    %552 = vmatmul.mubr.bf16.gmra.mrb[0].mxu0 %v518
    %v553 = vpop.f32.mrb[0].mxu0
    %v554 = vadd.f32 0.0, %v553
    %v555 = vpop.f32.mrb[0].mxu0
    %v556 = vpop.f32.mrb[0].mxu0
    %v557 = vadd.f32 0.0, %v556
    %v558 = vpop.f32.mrb[0].mxu0
    %559 = vdwg.mxu0
    %v560 = vadd.f32 %v516, %v554
    %v561 = vadd.f32 %v517, %v557
    %v562 = vtanh.pop %v560
    %v563 = vtanh.pop %v561
    %s564 = scalar_lea.vmem [#allocation3], 80
    %v565 = vld [vmem:[%s564] sm:$0xff]
    %v566 = vld [vmem:[%s564 + $0x8] sm:$0xff]
    %v567 = vpack.c.bf16 %v563, %v562
    %568 = vmatprep.subr.bf16.mxu0 0
    %569 = vmatpush1.bf16.msra.mxu0 %v307
    %570 = vmatprep.subr.bf16.mxu0 0
    %571 = vmatpush1.bf16.msra.mxu0 %v308
    %572 = vmatprep.subr.bf16.mxu0 0
    %573 = vmatpush1.bf16.msra.mxu0 %v309
    %574 = vmatprep.subr.bf16.mxu0 0
    %575 = vmatpush1.bf16.msra.mxu0 %v310
    %576 = vmatprep.subr.bf16.mxu0 0
    %577 = vmatpush1.bf16.msra.mxu0 %v311
    %578 = vmatprep.subr.bf16.mxu0 0
    %579 = vmatpush1.bf16.msra.mxu0 %v312
    %580 = vmatprep.subr.bf16.mxu0 0
    %581 = vmatpush1.bf16.msra.mxu0 %v313
    %582 = vmatprep.subr.bf16.mxu0 0
    %583 = vmatpush1.bf16.msra.mxu0 %v314
    %584 = vmatprep.subr.bf16.mxu0 0
    %585 = vmatpush1.bf16.msra.mxu0 0
    %586 = vmatprep.subr.bf16.mxu0 0
    %587 = vmatpush1.bf16.msra.mxu0 0
    %588 = vmatprep.subr.bf16.mxu0 0
    %589 = vmatpush1.bf16.msra.mxu0 0
    %590 = vmatprep.subr.bf16.mxu0 0
    %591 = vmatpush1.bf16.msra.mxu0 0
    %592 = vmatprep.subr.bf16.mxu0 0
    %593 = vmatpush1.bf16.msra.mxu0 0
    %594 = vmatprep.subr.bf16.mxu0 0
    %595 = vmatpush1.bf16.msra.mxu0 0
    %596 = vmatprep.subr.bf16.mxu0 0
    %597 = vmatpush1.bf16.msra.mxu0 0
    %598 = vmatprep.subr.bf16.mxu0 0
    %599 = vmatpush1.bf16.msra.mxu0 0
    %600 = vmatprep.mubr.bf16.mxu0 0
    %601 = vmatmul.mubr.bf16.gmra.mrb[0].mxu0 %v567
    %v602 = vpop.f32.mrb[0].mxu0
    %v603 = vadd.f32 0.0, %v602
    %v604 = vpop.f32.mrb[0].mxu0
    %v605 = vpop.f32.mrb[0].mxu0
    %v606 = vadd.f32 0.0, %v605
    %v607 = vpop.f32.mrb[0].mxu0
    %608 = vdwg.mxu0
    %v609 = vadd.f32 %v565, %v603
    %v610 = vadd.f32 %v566, %v606
    %v611 = vtanh.pop %v609
    %v612 = vtanh.pop %v610
    %s613 = scalar_lea.vmem [#allocation3], 96
    %v614 = vld [vmem:[%s613] sm:$0xff]
    %v615 = vld [vmem:[%s613 + $0x8] sm:$0xff]
    %v616 = vpack.c.bf16 %v612, %v611
    %617 = vmatprep.subr.bf16.mxu0 0
    %618 = vmatpush1.bf16.msra.mxu0 %v307
    %619 = vmatprep.subr.bf16.mxu0 0
    %620 = vmatpush1.bf16.msra.mxu0 %v308
    %621 = vmatprep.subr.bf16.mxu0 0
    %622 = vmatpush1.bf16.msra.mxu0 %v309
    %623 = vmatprep.subr.bf16.mxu0 0
    %624 = vmatpush1.bf16.msra.mxu0 %v310
    %625 = vmatprep.subr.bf16.mxu0 0
    %626 = vmatpush1.bf16.msra.mxu0 %v311
    %627 = vmatprep.subr.bf16.mxu0 0
    %628 = vmatpush1.bf16.msra.mxu0 %v312
    %629 = vmatprep.subr.bf16.mxu0 0
    %630 = vmatpush1.bf16.msra.mxu0 %v313
    %631 = vmatprep.subr.bf16.mxu0 0
    %632 = vmatpush1.bf16.msra.mxu0 %v314
    %633 = vmatprep.subr.bf16.mxu0 0
    %634 = vmatpush1.bf16.msra.mxu0 0
    %635 = vmatprep.subr.bf16.mxu0 0
    %636 = vmatpush1.bf16.msra.mxu0 0
    %637 = vmatprep.subr.bf16.mxu0 0
    %638 = vmatpush1.bf16.msra.mxu0 0
    %639 = vmatprep.subr.bf16.mxu0 0
    %640 = vmatpush1.bf16.msra.mxu0 0
    %641 = vmatprep.subr.bf16.mxu0 0
    %642 = vmatpush1.bf16.msra.mxu0 0
    %643 = vmatprep.subr.bf16.mxu0 0
    %644 = vmatpush1.bf16.msra.mxu0 0
    %645 = vmatprep.subr.bf16.mxu0 0
    %646 = vmatpush1.bf16.msra.mxu0 0
    %647 = vmatprep.subr.bf16.mxu0 0
    %648 = vmatpush1.bf16.msra.mxu0 0
    %649 = vmatprep.mubr.bf16.mxu0 0
    %650 = vmatmul.mubr.bf16.gmra.mrb[0].mxu0 %v616
    %v651 = vpop.f32.mrb[0].mxu0
    %v652 = vadd.f32 0.0, %v651
    %v653 = vpop.f32.mrb[0].mxu0
    %v654 = vpop.f32.mrb[0].mxu0
    %v655 = vadd.f32 0.0, %v654
    %v656 = vpop.f32.mrb[0].mxu0
    %657 = vdwg.mxu0
    %v658 = vadd.f32 %v614, %v652
    %v659 = vadd.f32 %v615, %v655
    %v660 = vtanh.pop %v658
    %v661 = vtanh.pop %v659
    %s662 = scalar_lea.vmem [#allocation3], 112
    %v663 = vld [vmem:[%s662] sm:$0xff]
    %v664 = vld [vmem:[%s662 + $0x8] sm:$0xff]
    %v665 = vpack.c.bf16 %v661, %v660
    %666 = vmatprep.subr.bf16.mxu0 0
    %667 = vmatpush1.bf16.msra.mxu0 %v307
    %668 = vmatprep.subr.bf16.mxu0 0
    %669 = vmatpush1.bf16.msra.mxu0 %v308
    %670 = vmatprep.subr.bf16.mxu0 0
    %671 = vmatpush1.bf16.msra.mxu0 %v309
    %672 = vmatprep.subr.bf16.mxu0 0
    %673 = vmatpush1.bf16.msra.mxu0 %v310
    %674 = vmatprep.subr.bf16.mxu0 0
    %675 = vmatpush1.bf16.msra.mxu0 %v311
    %676 = vmatprep.subr.bf16.mxu0 0
    %677 = vmatpush1.bf16.msra.mxu0 %v312
    %678 = vmatprep.subr.bf16.mxu0 0
    %679 = vmatpush1.bf16.msra.mxu0 %v313
    %680 = vmatprep.subr.bf16.mxu0 0
    %681 = vmatpush1.bf16.msra.mxu0 %v314
    %682 = vmatprep.subr.bf16.mxu0 0
    %683 = vmatpush1.bf16.msra.mxu0 0
    %684 = vmatprep.subr.bf16.mxu0 0
    %685 = vmatpush1.bf16.msra.mxu0 0
    %686 = vmatprep.subr.bf16.mxu0 0
    %687 = vmatpush1.bf16.msra.mxu0 0
    %688 = vmatprep.subr.bf16.mxu0 0
    %689 = vmatpush1.bf16.msra.mxu0 0
    %690 = vmatprep.subr.bf16.mxu0 0
    %691 = vmatpush1.bf16.msra.mxu0 0
    %692 = vmatprep.subr.bf16.mxu0 0
    %693 = vmatpush1.bf16.msra.mxu0 0
    %694 = vmatprep.subr.bf16.mxu0 0
    %695 = vmatpush1.bf16.msra.mxu0 0
    %696 = vmatprep.subr.bf16.mxu0 0
    %697 = vmatpush1.bf16.msra.mxu0 0
    %698 = vmatprep.mubr.bf16.mxu0 0
    %699 = vmatmul.mubr.bf16.gmra.mrb[0].mxu0 %v665
    %v700 = vpop.f32.mrb[0].mxu0
    %v701 = vadd.f32 0.0, %v700
    %v702 = vpop.f32.mrb[0].mxu0
    %v703 = vpop.f32.mrb[0].mxu0
    %v704 = vadd.f32 0.0, %v703
    %v705 = vpop.f32.mrb[0].mxu0
    %706 = vdwg.mxu0
    %v707 = vadd.f32 %v663, %v701
    %v708 = vadd.f32 %v664, %v704
    %v709 = vtanh.pop %v707
    %v710 = vtanh.pop %v708
    %711 = vst [vmem:[#allocation2] sm:$0xff] %v709
    %712 = vst [vmem:[#allocation2 + $0x8] sm:$0xff] %v710
    // Predicated region
    $region34: #{tpu_custom_call.1} parent=1 // pred_check
      %p713 = pneg %p39
    $region35: #{tpu_custom_call.1} parent=1 // pred_check_branch
      %715 = sbr.rel (%p713) target = $region37
    $region36: #{tpu_custom_call.1} parent=1 // pred_region
      %v716 = vld [vmem:[#allocation2] sm:$0xff]
      %v717 = vld [vmem:[#allocation2 + $0x8] sm:$0xff]
      %v718 = vpack.c.bf16 %v717, %v716
      %v719 = vld [vmem:[#allocation4] sm:$0xf]
      %v720 = vld [vmem:[#allocation4 + $0x4] sm:$0xf]
      %v721 = vld [vmem:[#allocation4 + $0x8] sm:$0xf]
      %v722 = vld [vmem:[#allocation4 + $0xc] sm:$0xf]
      %v723 = vld [vmem:[#allocation4 + $0x10] sm:$0xf]
      %v724 = vld [vmem:[#allocation4 + $0x14] sm:$0xf]
      %v725 = vld [vmem:[#allocation4 + $0x18] sm:$0xf]
      %v726 = vld [vmem:[#allocation4 + $0x1c] sm:$0xf]
      %v727 = vld [vmem:[#allocation4 + $0x20] sm:$0xf]
      %v728 = vld [vmem:[#allocation4 + $0x24] sm:$0xf]
      %v729 = vld [vmem:[#allocation4 + $0x28] sm:$0xf]
      %v730 = vld [vmem:[#allocation4 + $0x2c] sm:$0xf]
      %v731 = vld [vmem:[#allocation4 + $0x30] sm:$0xf]
      %v732 = vld [vmem:[#allocation4 + $0x34] sm:$0xf]
      %v733 = vld [vmem:[#allocation4 + $0x38] sm:$0xf]
      %v734 = vld [vmem:[#allocation4 + $0x3c] sm:$0xf]
      %v735 = vld [vmem:[%s5] sm:$0x1]
      %v737 = vlaneseq
      %v738 = vshrl.u32 %v737, 7
      %v739 = vsub.s32 0, %v738
      %v740 = vrot.slane %v735, %v739
      %v758 = vunpack.c.l.b16 %v719
      %v759 = vunpack.c.l.b16 %v720
      %v760 = vunpack.c.l.b16 %v721
      %v761 = vunpack.c.l.b16 %v722
      %v762 = vunpack.c.l.b16 %v723
      %v763 = vunpack.c.l.b16 %v724
      %v764 = vunpack.c.l.b16 %v725
      %v765 = vunpack.c.l.b16 %v726
      %v766 = vunpack.c.l.b16 %v727
      %v767 = vunpack.c.l.b16 %v728
      %v768 = vunpack.c.l.b16 %v729
      %v769 = vunpack.c.l.b16 %v730
      %v770 = vunpack.c.l.b16 %v731
      %v771 = vunpack.c.l.b16 %v732
      %v772 = vunpack.c.l.b16 %v733
      %v773 = vunpack.c.l.b16 %v734
      %v774 = vpack.c.b16 %v759, %v758
      %v775 = vpack.c.b16 %v761, %v760
      %v776 = vpack.c.b16 %v763, %v762
      %v777 = vpack.c.b16 %v765, %v764
      %v778 = vpack.c.b16 %v767, %v766
      %v779 = vpack.c.b16 %v769, %v768
      %v780 = vpack.c.b16 %v771, %v770
      %v781 = vpack.c.b16 %v773, %v772
      %790 = vmatprep.subr.bf16.mxu0 0
      %791 = vmatpush1.bf16.msra.mxu0 %v774
      %792 = vmatprep.subr.bf16.mxu0 0
      %793 = vmatpush1.bf16.msra.mxu0 %v775
      %794 = vmatprep.subr.bf16.mxu0 0
      %795 = vmatpush1.bf16.msra.mxu0 %v776
      %796 = vmatprep.subr.bf16.mxu0 0
      %797 = vmatpush1.bf16.msra.mxu0 %v777
      %798 = vmatprep.subr.bf16.mxu0 0
      %799 = vmatpush1.bf16.msra.mxu0 %v778
      %800 = vmatprep.subr.bf16.mxu0 0
      %801 = vmatpush1.bf16.msra.mxu0 %v779
      %802 = vmatprep.subr.bf16.mxu0 0
      %803 = vmatpush1.bf16.msra.mxu0 %v780
      %804 = vmatprep.subr.bf16.mxu0 0
      %805 = vmatpush1.bf16.msra.mxu0 %v781
      %806 = vmatprep.subr.bf16.mxu0 0
      %807 = vmatpush1.bf16.msra.mxu0 0
      %808 = vmatprep.subr.bf16.mxu0 0
      %809 = vmatpush1.bf16.msra.mxu0 0
      %810 = vmatprep.subr.bf16.mxu0 0
      %811 = vmatpush1.bf16.msra.mxu0 0
      %812 = vmatprep.subr.bf16.mxu0 0
      %813 = vmatpush1.bf16.msra.mxu0 0
      %814 = vmatprep.subr.bf16.mxu0 0
      %815 = vmatpush1.bf16.msra.mxu0 0
      %816 = vmatprep.subr.bf16.mxu0 0
      %817 = vmatpush1.bf16.msra.mxu0 0
      %818 = vmatprep.subr.bf16.mxu0 0
      %819 = vmatpush1.bf16.msra.mxu0 0
      %820 = vmatprep.subr.bf16.mxu0 0
      %821 = vmatpush1.bf16.msra.mxu0 0
      %822 = vmatprep.mubr.bf16.mxu0 0
      %823 = vmatmul.mubr.bf16.gmra.mrb[0].mxu0 %v718
      %v824 = vpop.f32.mrb[0].mxu0
      %v825 = vadd.f32 %v740, %v824
      %v826 = vpop.f32.mrb[0].mxu0
      %v827 = vpop.f32.mrb[0].mxu0
      %v828 = vadd.f32 %v740, %v827
      %v829 = vpop.f32.mrb[0].mxu0
      %830 = vdwg.mxu0
      %831 = vst [vmem:[#allocation7] sm:$0xff] %v825
      %832 = vst [vmem:[#allocation7 + $0x8] sm:$0xff] %v828
    $region37: #{tpu_custom_call.1} parent=1 // pred_fallthru
      _
    // Predicated region
    $region38: #{tpu_custom_call.1} parent=1 // pred_check
      _
    $region39: #{tpu_custom_call.1} parent=1 // pred_check_branch
      %834 = sbr.rel (0) target = $region41
    $region40: #{tpu_custom_call.1} parent=1 // pred_region
      %s836 = ssub.s32 256, 256
      %837 = vsyncadd [#allocation6], %s836
      %s838 = sshll.u32 [#allocation7], 4
      %s839 = int_to_ptr.vmem [resolvable:$true] %s838
      %844 = dma.vmem_to_hbm [thread:$0]  %s839, 256, %s6, [#allocation6], 128, 128, 8
    $region41: #{tpu_custom_call.1} parent=1 // pred_fallthru
      _
    // Predicated region
    $region42: #{tpu_custom_call.1} parent=1 // pred_check
      _
    $region43: #{tpu_custom_call.1} parent=1 // pred_check_branch
      %846 = sbr.rel (0) target = $region45
    $region44: #{tpu_custom_call.1} parent=1 // pred_region
      %847 = dma.done [#allocation6], 256
    $region45: #{tpu_custom_call.1} parent=1 // pred_fallthru
      _
    %848 = vsyncpa [#allocation5], 1
    %849 = vsyncpa [#allocation6], 1

</llo_original>
